<compile_context>
chip_gen: v7x
topology: tpu7x:2x2x1
jax: 0.10.0
libtpu: 0.0.40
codegen_flags: <defaults>
</compile_context>

<pallas_src>
import jax
import jax.numpy as jnp
from jax.experimental import pallas as pl
from jax.experimental.pallas import tpu as pltpu


# ----------------------------------------------------------------------------
# Synthetic cfg (the PyTorch module reads these from a global `cfg`).
# ----------------------------------------------------------------------------
class CFG:
    base_size = 16
    scales = (8.0, 16.0, 32.0)
    ratios = (0.5, 1.0, 2.0)
    rpn_inplane = 4          # small synthetic channel count
    feat_stride = 16
    roi_pool_size = 7
    spatial_scale = 1.0 / 16.0
    class_num = 21


cfg = CFG()
ANCHOR_NUM = len(cfg.ratios) * len(cfg.scales)   # 9
HIDDEN = 512                                     # rpn_net output channels
C_CLS = ANCHOR_NUM * 2                           # 18
C_BOX = ANCHOR_NUM * 4                           # 36
C_HEAD = C_CLS + C_BOX                           # 54
C_HEAD_PAD = 128                                 # lane-dense padded head width


# ----------------------------------------------------------------------------
# Pallas kernel: fused [3x3-conv-as-matmul, BN scale pre-folded into weight]
# -> [+BN shift (incl. conv bias)] -> ReLU -> [fused 1x1 cls|bbox head matmul,
# lane-dense 128-wide bf16 output].
# ----------------------------------------------------------------------------
def rpn_head_kernel(p_ref, wconv_ref, shift_ref, whead_ref, bhead_ref, o_ref):
    # 3x3 conv realized as im2col matmul on the MXU (bf16 operands, f32 acc).
    # The eval-mode BatchNorm scale is already folded into wconv.
    h = jnp.dot(p_ref[...], wconv_ref[...], preferred_element_type=jnp.float32)
    # Remaining BN shift (includes conv bias / running mean / beta), then ReLU.
    # Elementwise epilogue stays f32 (v5e has no bf16 VPU).
    h = jnp.maximum(h + shift_ref[...], 0.0)
    # cls and bbox 1x1 heads fused into ONE (512, 128) matmul -> unmasked,
    # lane-dense 128-wide store instead of two masked 18-/36-lane stores.
    out = jnp.dot(h.astype(jnp.bfloat16), whead_ref[...],
                  preferred_element_type=jnp.float32) + bhead_ref[...]
    o_ref[...] = out.astype(o_ref.dtype)


def _choose_row_tile(rows, target=256):
    """Fixed row tile: multiple of 16 (bf16 sublane packing), <= target, and
    small enough to give the BlockSpec pipeline >=4 steps whenever rows allow."""
    quarter = (rows // 4) // 16 * 16
    if quarter <= 0:
        return 16
    return max(16, min(target, quarter))


def _build_head_call(rows_p, kcin, tr, *, single_buffer_weights):
    grid = (rows_p // tr,)
    row_tiled = lambda r: (r, 0)
    full = lambda r: (0, 0)            # weights resident in VMEM across steps

    def weight_spec(shape):
        # wconv / shift / whead / bhead never change across grid steps, so a
        # single VMEM buffer suffices (halves their VMEM footprint).
        if single_buffer_weights:
            return pl.BlockSpec(shape, full, pipeline_mode=pl.Buffered(1))
        return pl.BlockSpec(shape, full)

    # VMEM budget: double-buffered bf16 patch + output tiles, single-buffered
    # weights.  Clamp to [32 MiB, 48 MiB]: never below the v6e/v7x default,
    # never near v7x's 64 MiB physical VMEM.
    vmem_bytes = (2 * tr * kcin * 2            # patches (bf16, double-buffered)
                  + kcin * HIDDEN * 2          # conv weight (bf16)
                  + HIDDEN * C_HEAD_PAD * 2    # fused head weight (bf16)
                  + HIDDEN * 4 + C_HEAD_PAD * 4
                  + 2 * tr * C_HEAD_PAD * 2)   # output (bf16, double-buffered)
    vmem_limit = min(48 << 20, max(32 << 20, int(1.5 * vmem_bytes) + (2 << 20)))

    return pl.pallas_call(
        rpn_head_kernel,
        out_shape=jax.ShapeDtypeStruct((rows_p, C_HEAD_PAD), jnp.bfloat16),
        grid_spec=pltpu.PrefetchScalarGridSpec(
            num_scalar_prefetch=0,
            grid=grid,
            in_specs=[
                pl.BlockSpec((tr, kcin), row_tiled),     # im2col patches (bf16)
                weight_spec((kcin, HIDDEN)),             # BN-scaled conv weight
                weight_spec((1, HIDDEN)),                # BN shift + conv bias
                weight_spec((HIDDEN, C_HEAD_PAD)),       # fused head weight
                weight_spec((1, C_HEAD_PAD)),            # fused head bias
            ],
            out_specs=pl.BlockSpec((tr, C_HEAD_PAD), row_tiled),
        ),
        compiler_params=pltpu.CompilerParams(
            dimension_semantics=("parallel",),
            vmem_limit_bytes=vmem_limit),
    )


def rpn_heads_pallas(patches, wconv, shift, whead, bhead):
    rows, kcin = patches.shape
    tr = _choose_row_tile(rows)
    rows_p = pl.cdiv(rows, tr) * tr
    if rows_p != rows:
        patches = jnp.pad(patches, ((0, rows_p - rows), (0, 0)))
    args = (patches, wconv, shift, whead, bhead)
    try:
        out = _build_head_call(rows_p, kcin, tr, single_buffer_weights=True)(*args)
        out = jax.block_until_ready(out)
    except Exception:
        # JAX versions without BlockSpec(pipeline_mode=...) support: fall back
        # to default double-buffered weight blocks (same numerics, more VMEM).
        out = _build_head_call(rows_p, kcin, tr, single_buffer_weights=False)(*args)
    return out[:rows]       # drop padded rows before the (N, H*W*A, .) reshape


# ----------------------------------------------------------------------------
# Glue: im2col, anchor generation, parameter construction.
# ----------------------------------------------------------------------------
def im2col_3x3(x_nchw):
    """NCHW -> (N*H*W, 9*Cin) bf16 patches, ordering (kh, kw, cin).

    Cast to bf16 BEFORE building the 9x-duplicated patch tensor so the glue
    HBM traffic is half of an f32 im2col.
    """
    # TODO(synk): at realistic Cin (512+) im2col is still 9x HBM traffic; a
    # row-band in-kernel conv (9 shifted matmuls with a halo DMA) would remove it.
    N, Cin, H, W = x_nchw.shape
    x = jnp.transpose(x_nchw, (0, 2, 3, 1)).astype(jnp.bfloat16)   # NHWC bf16
    xp = jnp.pad(x, ((0, 0), (1, 1), (1, 1), (0, 0)))
    cols = [xp[:, kh:kh + H, kw:kw + W, :]
            for kh in range(3) for kw in range(3)]
    patches = jnp.concatenate(cols, axis=-1)                       # (N,H,W,9*Cin)
    return patches.reshape(N * H * W, 9 * Cin)


def generate_anchors(base_size, scales, ratios, feat_h, feat_w, stride):
    """AnchorGenerator equivalent: (H*W*A, 4) anchors in (x1,y1,x2,y2)."""
    scales = jnp.array(scales, jnp.float32)
    ratios = jnp.array(ratios, jnp.float32)
    w = jnp.float32(base_size)
    h = jnp.float32(base_size)
    cx = 0.5 * (w - 1.0)
    cy = 0.5 * (h - 1.0)
    size = w * h
    ws_r = jnp.round(jnp.sqrt(size / ratios))
    hs_r = jnp.round(ws_r * ratios)
    ws = (ws_r[:, None] * scales[None, :]).reshape(-1)       # (A,)
    hs = (hs_r[:, None] * scales[None, :]).reshape(-1)
    base_anchors = jnp.stack(
        [cx - 0.5 * (ws - 1.0), cy - 0.5 * (hs - 1.0),
         cx + 0.5 * (ws - 1.0), cy + 0.5 * (hs - 1.0)], axis=1)   # (A, 4)
    shift_x = jnp.arange(feat_w, dtype=jnp.float32) * stride
    shift_y = jnp.arange(feat_h, dtype=jnp.float32) * stride
    sx, sy = jnp.meshgrid(shift_x, shift_y)
    shifts = jnp.stack([sx.ravel(), sy.ravel(), sx.ravel(), sy.ravel()], axis=1)
    anchors = (shifts[:, None, :] + base_anchors[None, :, :]).reshape(-1, 4)
    return anchors


def init_params(key, cin):
    ks = jax.random.split(key, 8)
    # rpn_net: Conv2d(cin, 512, 3, pad=1) -> im2col weight (9*cin, 512),
    # row order (kh, kw, cin) matching im2col_3x3 patch ordering.
    wconv = 0.05 * jax.random.normal(ks[0], (3, 3, cin, HIDDEN), jnp.float32)
    wconv = wconv.reshape(9 * cin, HIDDEN)
    bconv = 0.05 * jax.random.normal(ks[1], (HIDDEN,), jnp.float32)
    # rpn_bn: BatchNorm2d(512), eval-mode statistics.  Fold:
    #   y = scale*(conv(x) + bconv - mean) + beta
    #     = conv_with_scaled_weight(x) + shift
    gamma = 1.0 + 0.1 * jax.random.normal(ks[2], (HIDDEN,), jnp.float32)
    beta = 0.1 * jax.random.normal(ks[3], (HIDDEN,), jnp.float32)
    running_mean = jnp.zeros((HIDDEN,), jnp.float32)
    running_var = jnp.ones((HIDDEN,), jnp.float32)
    eps = 1e-5
    scale = gamma / jnp.sqrt(running_var + eps)
    shift = scale * (bconv - running_mean) + beta
    wconv_scaled = wconv * scale[None, :]        # BN scale folded into weight
    # 1x1 heads
    wcls = 0.05 * jax.random.normal(ks[4], (HIDDEN, C_CLS), jnp.float32)
    bcls = 0.05 * jax.random.normal(ks[5], (C_CLS,), jnp.float32)
    wbox = 0.05 * jax.random.normal(ks[6], (HIDDEN, C_BOX), jnp.float32)
    bbox = 0.05 * jax.random.normal(ks[7], (C_BOX,), jnp.float32)
    # Fuse cls|bbox head weights/bias and zero-pad output lanes to 128.
    whead = jnp.zeros((HIDDEN, C_HEAD_PAD), jnp.float32)
    whead = whead.at[:, :C_CLS].set(wcls).at[:, C_CLS:C_HEAD].set(wbox)
    bhead = jnp.zeros((1, C_HEAD_PAD), jnp.float32)
    bhead = bhead.at[0, :C_CLS].set(bcls).at[0, C_CLS:C_HEAD].set(bbox)
    return dict(
        wconv=wconv_scaled.astype(jnp.bfloat16),   # MXU operands in bf16
        shift=shift.reshape(1, HIDDEN),            # epilogue stays f32
        whead=whead.astype(jnp.bfloat16),
        bhead=bhead,
    )


def rpn_forward(feat_map_nchw, im_info, gt_boxes_with_cls, params):
    N, Cin, H, W = feat_map_nchw.shape
    gt_boxes = gt_boxes_with_cls[:, :4]                       # kept for parity
    del gt_boxes

    patches = im2col_3x3(feat_map_nchw)                       # (N*HW, 9*Cin) bf16
    fused = rpn_heads_pallas(
        patches, params["wconv"], params["shift"],
        params["whead"], params["bhead"])                     # (N*HW, 128) bf16

    # Equivalent of permute(0,2,3,1).view(N,-1,2) / (N,-1,4): channels-last
    # rows; slice the fused lane-dense output into the two heads, promote f32.
    rpn_score_reshape = fused[:, :C_CLS].astype(jnp.float32).reshape(
        N, H * W * ANCHOR_NUM, 2)
    rpn_bbox_reshape = fused[:, C_CLS:C_HEAD].astype(jnp.float32).reshape(
        N, H * W * ANCHOR_NUM, 4)

    anchors = generate_anchors(cfg.base_size, cfg.scales, cfg.ratios,
                               H, W, cfg.feat_stride)

    # TODO(synk): Proposal_Layer (box decode + NMS), RoIPool, Anchor_Target_Layer
    # and Proposal_Target_Layer are data-dependent gather/sort/NMS stages with no
    # clean Pallas equivalent; not implemented here.
    return rpn_score_reshape, rpn_bbox_reshape, anchors


if __name__ == "__main__":
    key = jax.random.PRNGKey(0)
    k_feat, k_gt, k_param = jax.random.split(key, 3)

    N, Cin, H, W = 2, cfg.rpn_inplane, 16, 16
    feat_map = jax.random.normal(k_feat, (N, Cin, H, W), jnp.float32)
    im_info = jnp.array([H * cfg.feat_stride, W * cfg.feat_stride, 1.0],
                        jnp.float32)
    gt_boxes_with_cls = jnp.concatenate(
        [jnp.abs(jax.random.normal(k_gt, (3, 4), jnp.float32)) * 50.0,
         jnp.array([[1.0], [2.0], [3.0]], jnp.float32)], axis=1)

    params = init_params(k_param, Cin)

    scores, bboxes, anchors = rpn_forward(feat_map, im_info,
                                          gt_boxes_with_cls, params)
    jax.block_until_ready((scores, bboxes, anchors))

    assert scores.shape == (N, H * W * ANCHOR_NUM, 2)
    assert bboxes.shape == (N, H * W * ANCHOR_NUM, 4)
    assert anchors.shape == (H * W * ANCHOR_NUM, 4)
    print("KERNEL_OK")
</pallas_src>

<mosaic_0001>
module attributes {stable_mosaic.version = 11 : i64} {
  func.func @rpn_head_kernel(%arg0: i32, %arg1: memref<128x36xbf16, #tpu.memory_space<vmem>>, %arg2: memref<36x512xbf16, #tpu.memory_space<vmem>>, %arg3: memref<1x512xf32, #tpu.memory_space<vmem>>, %arg4: memref<512x128xbf16, #tpu.memory_space<vmem>>, %arg5: memref<1x128xf32, #tpu.memory_space<vmem>>, %arg6: memref<128x128xbf16, #tpu.memory_space<vmem>>) attributes {dimension_semantics = [#tpu.dimension_semantics<parallel>], iteration_bounds = array<i64: 4>, scalar_prefetch = 0 : i64, scratch_operands = 0 : i64, tpu.core_type = #tpu.core_type<tc>, window_params = [{transform_indices = @transform_0, window_bounds = array<i64: 128, 36>}, {pipeline_mode = #tpu.pipeline_mode<synchronous>, transform_indices = @transform_1, window_bounds = array<i64: 36, 512>}, {pipeline_mode = #tpu.pipeline_mode<synchronous>, transform_indices = @transform_2, window_bounds = array<i64: 1, 512>}, {pipeline_mode = #tpu.pipeline_mode<synchronous>, transform_indices = @transform_3, window_bounds = array<i64: 512, 128>}, {pipeline_mode = #tpu.pipeline_mode<synchronous>, transform_indices = @transform_4, window_bounds = array<i64: 1, 128>}, {transform_indices = @transform_5, window_bounds = array<i64: 128, 128>}]} {
    %c0 = arith.constant 0 : index
    %c0_0 = arith.constant 0 : index
    %0 = vector.load %arg1[%c0, %c0_0] : memref<128x36xbf16, #tpu.memory_space<vmem>>, vector<128x36xbf16>
    %c0_1 = arith.constant 0 : index
    %c0_2 = arith.constant 0 : index
    %1 = vector.load %arg2[%c0_1, %c0_2] : memref<36x512xbf16, #tpu.memory_space<vmem>>, vector<36x512xbf16>
    %cst = arith.constant dense<0.000000e+00> : vector<128x512xf32>
    %2 = tpu.matmul %0, %1, %cst {dimension_numbers = #tpu.dot_dimension_numbers<[1], [0], [0], [1], [0, 0, 1, 1], [], []>} : vector<128x36xbf16>, vector<36x512xbf16>, vector<128x512xf32> -> vector<128x512xf32>
    %c0_3 = arith.constant 0 : index
    %c0_4 = arith.constant 0 : index
    %3 = vector.load %arg3[%c0_3, %c0_4] : memref<1x512xf32, #tpu.memory_space<vmem>>, vector<1x512xf32>
    %4 = vector.broadcast %3 : vector<1x512xf32> to vector<128x512xf32>
    %5 = arith.addf %2, %4 : vector<128x512xf32>
    %cst_5 = arith.constant 0.000000e+00 : f32
    %6 = vector.broadcast %cst_5 : f32 to vector<128x512xf32>
    %7 = arith.maximumf %5, %6 : vector<128x512xf32>
    %8 = arith.truncf %7 : vector<128x512xf32> to vector<128x512xbf16>
    %c0_6 = arith.constant 0 : index
    %c0_7 = arith.constant 0 : index
    %9 = vector.load %arg4[%c0_6, %c0_7] : memref<512x128xbf16, #tpu.memory_space<vmem>>, vector<512x128xbf16>
    %cst_8 = arith.constant dense<0.000000e+00> : vector<128x128xf32>
    %10 = tpu.matmul %8, %9, %cst_8 {dimension_numbers = #tpu.dot_dimension_numbers<[1], [0], [0], [1], [0, 0, 1, 1], [], []>} : vector<128x512xbf16>, vector<512x128xbf16>, vector<128x128xf32> -> vector<128x128xf32>
    %c0_9 = arith.constant 0 : index
    %c0_10 = arith.constant 0 : index
    %11 = vector.load %arg5[%c0_9, %c0_10] : memref<1x128xf32, #tpu.memory_space<vmem>>, vector<1x128xf32>
    %12 = vector.broadcast %11 : vector<1x128xf32> to vector<128x128xf32>
    %13 = arith.addf %10, %12 : vector<128x128xf32>
    %14 = arith.truncf %13 : vector<128x128xf32> to vector<128x128xbf16>
    %c0_11 = arith.constant 0 : index
    %c0_12 = arith.constant 0 : index
    %15 = vector.load %arg6[%c0_11, %c0_12] : memref<128x128xbf16, #tpu.memory_space<vmem>>, vector<128x128xbf16>
    tpu.vector_store %arg6[%c0_11, %c0_12], %14 {strides = array<i32>} : memref<128x128xbf16, #tpu.memory_space<vmem>>, vector<128x128xbf16>,
    return
  }
  func.func @transform_0(%arg0: i32) -> (i32, i32) {
    %c0_i32 = arith.constant 0 : i32
    %c0_i32_0 = arith.constant 0 : i32
    return %arg0, %c0_i32 : i32, i32
  }
  func.func @transform_1(%arg0: i32) -> (i32, i32) {
    %c0_i32 = arith.constant 0 : i32
    %c0_i32_0 = arith.constant 0 : i32
    %c0_i32_1 = arith.constant 0 : i32
    return %c0_i32, %c0_i32_0 : i32, i32
  }
  func.func @transform_2(%arg0: i32) -> (i32, i32) {
    %c0_i32 = arith.constant 0 : i32
    %c0_i32_0 = arith.constant 0 : i32
    %c0_i32_1 = arith.constant 0 : i32
    return %c0_i32, %c0_i32_0 : i32, i32
  }
  func.func @transform_3(%arg0: i32) -> (i32, i32) {
    %c0_i32 = arith.constant 0 : i32
    %c0_i32_0 = arith.constant 0 : i32
    %c0_i32_1 = arith.constant 0 : i32
    return %c0_i32, %c0_i32_0 : i32, i32
  }
  func.func @transform_4(%arg0: i32) -> (i32, i32) {
    %c0_i32 = arith.constant 0 : i32
    %c0_i32_0 = arith.constant 0 : i32
    %c0_i32_1 = arith.constant 0 : i32
    return %c0_i32, %c0_i32_0 : i32, i32
  }
  func.func @transform_5(%arg0: i32) -> (i32, i32) {
    %c0_i32 = arith.constant 0 : i32
    %c0_i32_0 = arith.constant 0 : i32
    return %arg0, %c0_i32 : i32, i32
  }
}

module attributes {stable_mosaic.version = 11 : i64} {
  func.func @rpn_head_kernel(%arg0: i32, %arg1: memref<128x36xbf16, #tpu.memory_space<vmem>>, %arg2: memref<36x512xbf16, #tpu.memory_space<vmem>>, %arg3: memref<1x512xf32, #tpu.memory_space<vmem>>, %arg4: memref<512x128xbf16, #tpu.memory_space<vmem>>, %arg5: memref<1x128xf32, #tpu.memory_space<vmem>>, %arg6: memref<128x128xbf16, #tpu.memory_space<vmem>>) attributes {dimension_semantics = [#tpu.dimension_semantics<parallel>], iteration_bounds = array<i64: 4>, scalar_prefetch = 0 : i64, scratch_operands = 0 : i64, tpu.core_type = #tpu.core_type<tc>, window_params = [{transform_indices = @transform_0, window_bounds = array<i64: 128, 36>}, {pipeline_mode = #tpu.pipeline_mode<synchronous>, transform_indices = @transform_1, window_bounds = array<i64: 36, 512>}, {pipeline_mode = #tpu.pipeline_mode<synchronous>, transform_indices = @transform_2, window_bounds = array<i64: 1, 512>}, {pipeline_mode = #tpu.pipeline_mode<synchronous>, transform_indices = @transform_3, window_bounds = array<i64: 512, 128>}, {pipeline_mode = #tpu.pipeline_mode<synchronous>, transform_indices = @transform_4, window_bounds = array<i64: 1, 128>}, {transform_indices = @transform_5, window_bounds = array<i64: 128, 128>}]} {
    %c0 = arith.constant 0 : index
    %c0_0 = arith.constant 0 : index
    %0 = vector.load %arg1[%c0, %c0_0] : memref<128x36xbf16, #tpu.memory_space<vmem>>, vector<128x36xbf16>
    %c0_1 = arith.constant 0 : index
    %c0_2 = arith.constant 0 : index
    %1 = vector.load %arg2[%c0_1, %c0_2] : memref<36x512xbf16, #tpu.memory_space<vmem>>, vector<36x512xbf16>
    %cst = arith.constant dense<0.000000e+00> : vector<128x512xf32>
    %2 = tpu.matmul %0, %1, %cst {dimension_numbers = #tpu.dot_dimension_numbers<[1], [0], [0], [1], [0, 0, 1, 1], [], []>} : vector<128x36xbf16>, vector<36x512xbf16>, vector<128x512xf32> -> vector<128x512xf32>
    %c0_3 = arith.constant 0 : index
    %c0_4 = arith.constant 0 : index
    %3 = vector.load %arg3[%c0_3, %c0_4] : memref<1x512xf32, #tpu.memory_space<vmem>>, vector<1x512xf32>
    %4 = vector.broadcast %3 : vector<1x512xf32> to vector<128x512xf32>
    %5 = arith.addf %2, %4 : vector<128x512xf32>
    %cst_5 = arith.constant 0.000000e+00 : f32
    %6 = vector.broadcast %cst_5 : f32 to vector<128x512xf32>
    %7 = arith.maximumf %5, %6 : vector<128x512xf32>
    %8 = arith.truncf %7 : vector<128x512xf32> to vector<128x512xbf16>
    %c0_6 = arith.constant 0 : index
    %c0_7 = arith.constant 0 : index
    %9 = vector.load %arg4[%c0_6, %c0_7] : memref<512x128xbf16, #tpu.memory_space<vmem>>, vector<512x128xbf16>
    %cst_8 = arith.constant dense<0.000000e+00> : vector<128x128xf32>
    %10 = tpu.matmul %8, %9, %cst_8 {dimension_numbers = #tpu.dot_dimension_numbers<[1], [0], [0], [1], [0, 0, 1, 1], [], []>} : vector<128x512xbf16>, vector<512x128xbf16>, vector<128x128xf32> -> vector<128x128xf32>
    %c0_9 = arith.constant 0 : index
    %c0_10 = arith.constant 0 : index
    %11 = vector.load %arg5[%c0_9, %c0_10] : memref<1x128xf32, #tpu.memory_space<vmem>>, vector<1x128xf32>
    %12 = vector.broadcast %11 : vector<1x128xf32> to vector<128x128xf32>
    %13 = arith.addf %10, %12 : vector<128x128xf32>
    %14 = arith.truncf %13 : vector<128x128xf32> to vector<128x128xbf16>
    %c0_11 = arith.constant 0 : index
    %c0_12 = arith.constant 0 : index
    %15 = vector.load %arg6[%c0_11, %c0_12] : memref<128x128xbf16, #tpu.memory_space<vmem>>, vector<128x128xbf16>
    tpu.vector_store %arg6[%c0_11, %c0_12], %14 {strides = array<i32>} : memref<128x128xbf16, #tpu.memory_space<vmem>>, vector<128x128xbf16>,
    return
  }
  func.func @transform_0(%arg0: i32) -> (i32, i32) {
    %c0_i32 = arith.constant 0 : i32
    %c0_i32_0 = arith.constant 0 : i32
    return %arg0, %c0_i32 : i32, i32
  }
  func.func @transform_1(%arg0: i32) -> (i32, i32) {
    %c0_i32 = arith.constant 0 : i32
    %c0_i32_0 = arith.constant 0 : i32
    %c0_i32_1 = arith.constant 0 : i32
    return %c0_i32, %c0_i32_0 : i32, i32
  }
  func.func @transform_2(%arg0: i32) -> (i32, i32) {
    %c0_i32 = arith.constant 0 : i32
    %c0_i32_0 = arith.constant 0 : i32
    %c0_i32_1 = arith.constant 0 : i32
    return %c0_i32, %c0_i32_0 : i32, i32
  }
  func.func @transform_3(%arg0: i32) -> (i32, i32) {
    %c0_i32 = arith.constant 0 : i32
    %c0_i32_0 = arith.constant 0 : i32
    %c0_i32_1 = arith.constant 0 : i32
    return %c0_i32, %c0_i32_0 : i32, i32
  }
  func.func @transform_4(%arg0: i32) -> (i32, i32) {
    %c0_i32 = arith.constant 0 : i32
    %c0_i32_0 = arith.constant 0 : i32
    %c0_i32_1 = arith.constant 0 : i32
    return %c0_i32, %c0_i32_0 : i32, i32
  }
  func.func @transform_5(%arg0: i32) -> (i32, i32) {
    %c0_i32 = arith.constant 0 : i32
    %c0_i32_0 = arith.constant 0 : i32
    return %arg0, %c0_i32 : i32, i32
  }
}

</mosaic_0001>

<llo_original>
// kernel: tpu_custom_call.1
$region0: #{tpu_custom_call.1}
  #allocation0 [shape = 'u32[]', space=smem, size = 0x4, offset = 0x4, fixed_abs, tag = 'smem constant byte address 0x4 - core index']
  #allocation1 [shape = 'u32[144,128]{1,0:T(1,128)}', space=vmem, size = 0x12000, scoped, tag = 'internal scratch']
  %s0 = inlined_call_operand.vmem [shape: bf16[512,36], index: 0, kind: input, shape index: {}]
  %s1 = inlined_call_operand.vmem [shape: bf16[36,512], index: 1, kind: input, shape index: {}]
  %s2 = inlined_call_operand.vmem [shape: f32[1,512], index: 2, kind: input, shape index: {}]
  %s3 = inlined_call_operand.vmem [shape: bf16[512,128], index: 3, kind: input, shape index: {}]
  %s4 = inlined_call_operand.vmem [shape: f32[1,128], index: 4, kind: input, shape index: {}]
  %s5 = inlined_call_operand.hbm [shape: bf16[512,128], index: 5, kind: output, shape index: {}]
  %s6 = sld [smem:[#allocation0]]
  $region53: #{tpu_custom_call.1} parent=0
    _
  %s8 = ssub.s32 1, %s6
  %s9 = scalar_select 0, %s8, %s6
  $region1: #{tpu_custom_call.1} parent=0
    #allocation2 [shape = 'u8[65536]{0}', space=vmem, size = 0x10000, scoped, tag = 'output window, operand 0']
    #allocation3 [shape = 's32[2]{0}', space=sflag, size = 0x8, scoped, tag = 'scoped memory for tpu_custom_call.1']
    %10 = vsyncpa [#allocation3], 0
    %s11 = scalar_lea.sflag [#allocation3], 1
    %12 = vsyncpa %s11, 0
    loop: start=0, step=1, limit=6
    $region2: #{tpu_custom_call.1} parent=1 // loop_pre_header
      _
    $region3: #{tpu_custom_call.1} parent=1 // loop_header
      %s14 = sphi 0, %s18
      %p15 = scmp.ge.s32.totalorder %s14, 6
      %s24 = sphi 0, %s26
      %s27 = sphi 0, %s24
      %s28 = sphi 0, %s27
      %s44 = sphi 0, %s28
      %s48 = sphi 0, %s48
      %s50 = sphi 0, %s48
      %s51 = sphi 0, %s50
      %s65 = sphi 0, %s51
      %s69 = sphi 0, %s69
      %s71 = sphi 0, %s69
      %s72 = sphi 0, %s71
      %s86 = sphi 0, %s72
      %s90 = sphi 0, %s90
      %s92 = sphi 0, %s90
      %s93 = sphi 0, %s92
      %s107 = sphi 0, %s93
      %s111 = sphi 0, %s111
      %s113 = sphi 0, %s111
      %s114 = sphi 0, %s113
      %s128 = sphi 0, %s114
      %s134 = sphi 0, %s136
      %s137 = sphi 0, %s134
      %s138 = sphi 0, %s137
      %s154 = sphi 0, %s138
    $region4: #{tpu_custom_call.1} parent=1 // loop_header_branch
      %17 = sbr.rel (%p15) target = $region8
    $region5: #{tpu_custom_call.1} parent=1 // loop_body
      %s19 = ssub.s32 %s14, 1
      %s20 = ssub.s32 %s14, 2
      %s21 = sadd.s32 %s14, 1
      %s22 = ssub.s32 %s14, %s21
      %p23 = scmp.eq.s32.totalorder %s22, 0
      %s25 = sadd.s32 %s24, 1
      %s26 = scalar_select %p23, %s24, %s25
      %p29 = pneg %p23
      %p30 = scmp.eq.s32.totalorder %s14, 3
      %p31 = por %p29, %p30
      %p32 = scmp.ne.s32.totalorder %s24, %s27
      %p33 = scmp.eq.s32.totalorder %s14, 0
      %p34 = por %p32, %p33
      %p35 = scmp.ne.s32.totalorder %s24, %s27
      %p36 = scmp.eq.s32.totalorder %s19, 3
      %p37 = por %p35, %p36
      %p38 = scmp.ne.s32.totalorder %s27, %s28
      %p39 = scmp.eq.s32.totalorder %s19, 0
      %p40 = por %p38, %p39
      %p41 = scmp.ne.s32.totalorder %s27, %s28
      %p42 = scmp.eq.s32.totalorder %s20, 3
      %p43 = por %p41, %p42
      %p45 = scmp.ne.s32.totalorder %s28, %s44
      %p46 = scmp.eq.s32.totalorder %s20, 0
      %p47 = por %p45, %p46
      %s49 = sadd.s32 %s48, 1
      %p52 = scmp.eq.s32.totalorder %s14, 3
      %p53 = scmp.ne.s32.totalorder %s48, %s50
      %p54 = scmp.eq.s32.totalorder %s14, 0
      %p55 = por %p53, %p54
      %p56 = scmp.ne.s32.totalorder %s48, %s50
      %p57 = scmp.eq.s32.totalorder %s19, 3
      %p58 = por %p56, %p57
      %p59 = scmp.ne.s32.totalorder %s50, %s51
      %p60 = scmp.eq.s32.totalorder %s19, 0
      %p61 = por %p59, %p60
      %p62 = scmp.ne.s32.totalorder %s50, %s51
      %p63 = scmp.eq.s32.totalorder %s20, 3
      %p64 = por %p62, %p63
      %p66 = scmp.ne.s32.totalorder %s51, %s65
      %p67 = scmp.eq.s32.totalorder %s20, 0
      %p68 = por %p66, %p67
      %s70 = sadd.s32 %s69, 1
      %p73 = scmp.eq.s32.totalorder %s14, 3
      %p74 = scmp.ne.s32.totalorder %s69, %s71
      %p75 = scmp.eq.s32.totalorder %s14, 0
      %p76 = por %p74, %p75
      %p77 = scmp.ne.s32.totalorder %s69, %s71
      %p78 = scmp.eq.s32.totalorder %s19, 3
      %p79 = por %p77, %p78
      %p80 = scmp.ne.s32.totalorder %s71, %s72
      %p81 = scmp.eq.s32.totalorder %s19, 0
      %p82 = por %p80, %p81
      %p83 = scmp.ne.s32.totalorder %s71, %s72
      %p84 = scmp.eq.s32.totalorder %s20, 3
      %p85 = por %p83, %p84
      %p87 = scmp.ne.s32.totalorder %s72, %s86
      %p88 = scmp.eq.s32.totalorder %s20, 0
      %p89 = por %p87, %p88
      %s91 = sadd.s32 %s90, 1
      %p94 = scmp.eq.s32.totalorder %s14, 3
      %p95 = scmp.ne.s32.totalorder %s90, %s92
      %p96 = scmp.eq.s32.totalorder %s14, 0
      %p97 = por %p95, %p96
      %p98 = scmp.ne.s32.totalorder %s90, %s92
      %p99 = scmp.eq.s32.totalorder %s19, 3
      %p100 = por %p98, %p99
      %p101 = scmp.ne.s32.totalorder %s92, %s93
      %p102 = scmp.eq.s32.totalorder %s19, 0
      %p103 = por %p101, %p102
      %p104 = scmp.ne.s32.totalorder %s92, %s93
      %p105 = scmp.eq.s32.totalorder %s20, 3
      %p106 = por %p104, %p105
      %p108 = scmp.ne.s32.totalorder %s93, %s107
      %p109 = scmp.eq.s32.totalorder %s20, 0
      %p110 = por %p108, %p109
      %s112 = sadd.s32 %s111, 1
      %p115 = scmp.eq.s32.totalorder %s14, 3
      %p116 = scmp.ne.s32.totalorder %s111, %s113
      %p117 = scmp.eq.s32.totalorder %s14, 0
      %p118 = por %p116, %p117
      %p119 = scmp.ne.s32.totalorder %s111, %s113
      %p120 = scmp.eq.s32.totalorder %s19, 3
      %p121 = por %p119, %p120
      %p122 = scmp.ne.s32.totalorder %s113, %s114
      %p123 = scmp.eq.s32.totalorder %s19, 0
      %p124 = por %p122, %p123
      %p125 = scmp.ne.s32.totalorder %s113, %s114
      %p126 = scmp.eq.s32.totalorder %s20, 3
      %p127 = por %p125, %p126
      %p129 = scmp.ne.s32.totalorder %s114, %s128
      %p130 = scmp.eq.s32.totalorder %s20, 0
      %p131 = por %p129, %p130
      %s132 = ssub.s32 %s14, %s21
      %p133 = scmp.eq.s32.totalorder %s132, 0
      %s135 = sadd.s32 %s134, 1
      %s136 = scalar_select %p133, %s134, %s135
      %p139 = pneg %p133
      %p140 = scmp.eq.s32.totalorder %s14, 3
      %p141 = por %p139, %p140
      %p142 = scmp.ne.s32.totalorder %s134, %s137
      %p143 = scmp.eq.s32.totalorder %s14, 0
      %p144 = por %p142, %p143
      %p145 = scmp.ne.s32.totalorder %s134, %s137
      %p146 = scmp.eq.s32.totalorder %s19, 3
      %p147 = por %p145, %p146
      %p148 = scmp.ne.s32.totalorder %s137, %s138
      %p149 = scmp.eq.s32.totalorder %s19, 0
      %p150 = por %p148, %p149
      %p151 = scmp.ne.s32.totalorder %s137, %s138
      %p152 = scmp.eq.s32.totalorder %s20, 3
      %p153 = por %p151, %p152
      %p155 = scmp.ne.s32.totalorder %s138, %s154
      %p156 = scmp.eq.s32.totalorder %s20, 0
      %p157 = por %p155, %p156
      %p158 = scmp.le.s32.totalorder 1, %s14
      %p159 = scmp.lt.s32.totalorder %s14, 5
      %p160 = pnand %p158, %p159
      %p161 = pneg %p160
      // Predicated region
      $region9: #{tpu_custom_call.1} parent=5 // pred_check
        _
      $region10: #{tpu_custom_call.1} parent=5 // pred_check_branch
        %163 = sbr.rel (%p160) target = $region12
      $region11: #{tpu_custom_call.1} parent=5 // pred_region
        %s164 = ssub.s32 %s14, 1
        // Predicated region
        $region13: #{tpu_custom_call.1} parent=11 // pred_check
          %p165 = pneg %p61
        $region14: #{tpu_custom_call.1} parent=11 // pred_check_branch
          %167 = sbr.rel (%p165) target = $region16
        $region15: #{tpu_custom_call.1} parent=11 // pred_region
          _
        $region16: #{tpu_custom_call.1} parent=11 // pred_fallthru
          _
        // Predicated region
        $region17: #{tpu_custom_call.1} parent=11 // pred_check
          %p168 = pneg %p82
        $region18: #{tpu_custom_call.1} parent=11 // pred_check_branch
          %170 = sbr.rel (%p168) target = $region20
        $region19: #{tpu_custom_call.1} parent=11 // pred_region
          _
        $region20: #{tpu_custom_call.1} parent=11 // pred_fallthru
          _
        // Predicated region
        $region21: #{tpu_custom_call.1} parent=11 // pred_check
          %p171 = pneg %p103
        $region22: #{tpu_custom_call.1} parent=11 // pred_check_branch
          %173 = sbr.rel (%p171) target = $region24
        $region23: #{tpu_custom_call.1} parent=11 // pred_region
          _
        $region24: #{tpu_custom_call.1} parent=11 // pred_fallthru
          _
        // Predicated region
        $region25: #{tpu_custom_call.1} parent=11 // pred_check
          %p174 = pneg %p124
        $region26: #{tpu_custom_call.1} parent=11 // pred_check_branch
          %176 = sbr.rel (%p174) target = $region28
        $region27: #{tpu_custom_call.1} parent=11 // pred_region
          _
        $region28: #{tpu_custom_call.1} parent=11 // pred_fallthru
          _
      $region12: #{tpu_custom_call.1} parent=5 // pred_fallthru
        _
      %p177 = scmp.lt.s32.totalorder %s14, 4
      // Predicated region
      $region29: #{tpu_custom_call.1} parent=5 // pred_check
        %p178 = pneg %p177
      $region30: #{tpu_custom_call.1} parent=5 // pred_check_branch
        %180 = sbr.rel (%p178) target = $region32
      $region31: #{tpu_custom_call.1} parent=5 // pred_region
        // Predicated region
        $region33: #{tpu_custom_call.1} parent=31 // pred_check
          %p181 = pneg %p34
        $region34: #{tpu_custom_call.1} parent=31 // pred_check_branch
          %183 = sbr.rel (%p181) target = $region36
        $region35: #{tpu_custom_call.1} parent=31 // pred_region
          %s184 = smul.u32 16, %s14
          %p185 = scmp.lt.s32.totalorder %s184, 63
          %s186 = scalar_select %p185, %s184, 63
          %s187 = smul.addr %s186, 4
          %s188 = scalar_lea.vmem %s0, %s187
          %s189 = smul.u32 16, %s14
        $region36: #{tpu_custom_call.1} parent=31 // pred_fallthru
          _
      $region32: #{tpu_custom_call.1} parent=5 // pred_fallthru
        _
      %p190 = scmp.le.s32.totalorder 1, %s14
      %p191 = scmp.lt.s32.totalorder %s14, 5
      %p192 = pnand %p190, %p191
      %p193 = pneg %p192
      // Predicated region
      $region37: #{tpu_custom_call.1} parent=5 // pred_check
        _
      $region38: #{tpu_custom_call.1} parent=5 // pred_check_branch
        %195 = sbr.rel (%p192) target = $region40
      $region39: #{tpu_custom_call.1} parent=5 // pred_region
        %s196 = ssub.s32 %s14, 1
        %s197 = smul.u32 16, %s19
        %p198 = scmp.lt.s32.totalorder %s197, 63
        %s199 = scalar_select %p198, %s197, 63
        %s200 = smul.addr %s199, 4
        %s201 = scalar_lea.vmem %s0, %s200
        %p202 = pneg %p40
        %p203 = pneg %p37
        %p204 = pneg %p61
        %p205 = pneg %p58
        %p206 = pneg %p82
        %p207 = pneg %p79
        %p208 = pneg %p103
        %p209 = pneg %p100
        %p210 = pneg %p124
        %p211 = pneg %p121
        %p212 = pneg %p150
        %p213 = pneg %p147
        %s214 = sand.u32 %s137, 1
        %s215 = scalar_lea.sflag [#allocation3], %s214
        %s216 = sand.u32 %s137, 1
        %s217 = smul.addr %s216, 64
        %s218 = scalar_lea.vmem [#allocation2], %s217
        %s219 = smul.u32 16, %s19
        %p220 = scmp.lt.s32.totalorder %s219, 63
        %s221 = scalar_select %p220, %s219, 63
        %s222 = smul.addr %s221, 4
        %s223 = scalar_lea.vmem %s0, %s222
        %s224 = smul.u32 16, %s19
        %s225 = smul.u32 16, %s19
        %v227 = vld [vmem:[%s223] sm:$0xf]
        %v228 = vld [vmem:[%s223 + $0x4] sm:$0xf]
        %v229 = vld [vmem:[%s223 + $0x8] sm:$0xf]
        %v230 = vld [vmem:[%s223 + $0xc] sm:$0xf]
        %v231 = vld [vmem:[%s223 + $0x10] sm:$0xf]
        %v232 = vld [vmem:[%s223 + $0x14] sm:$0xf]
        %v233 = vld [vmem:[%s223 + $0x18] sm:$0xf]
        %v234 = vld [vmem:[%s223 + $0x1c] sm:$0xf]
        %v235 = vld [vmem:[%s223 + $0x20] sm:$0xf]
        %v236 = vld [vmem:[%s223 + $0x24] sm:$0xf]
        %v237 = vld [vmem:[%s223 + $0x28] sm:$0xf]
        %v238 = vld [vmem:[%s223 + $0x2c] sm:$0xf]
        %v239 = vld [vmem:[%s223 + $0x30] sm:$0xf]
        %v240 = vld [vmem:[%s223 + $0x34] sm:$0xf]
        %v241 = vld [vmem:[%s223 + $0x38] sm:$0xf]
        %v242 = vld [vmem:[%s223 + $0x3c] sm:$0xf]
        %v243 = vld [vmem:[%s1] sm:$0xff]
        %v244 = vld [vmem:[%s1 + $0x8] sm:$0xff]
        %v245 = vld [vmem:[%s1 + $0x10] sm:$0xff]
        %v246 = vld [vmem:[%s1 + $0x18] sm:$0xff]
        %v247 = vld [vmem:[%s1 + $0x20] sm:$0xff]
        %v248 = vld [vmem:[%s1 + $0x28] sm:$0xff]
        %v249 = vld [vmem:[%s1 + $0x30] sm:$0xff]
        %v250 = vld [vmem:[%s1 + $0x38] sm:$0xff]
        %v251 = vld [vmem:[%s1 + $0x40] sm:$0x33]
        %v252 = vld [vmem:[%s1 + $0x48] sm:$0x33]
        %v253 = vld [vmem:[%s2] sm:$0xf]
        %v255 = vlaneseq
        %v256 = vshrl.u32 %v255, 7
        %v257 = vsub.s32 0, %v256
        %v258 = vrot.slane %v253, %v257
        %v259 = vlaneseq
        %v260 = vshrl.u32 %v259, 7
        %v261 = vsub.s32 1, %v260
        %v262 = vrot.slane %v253, %v261
        %v263 = vlaneseq
        %v264 = vshrl.u32 %v263, 7
        %v265 = vsub.s32 2, %v264
        %v266 = vrot.slane %v253, %v265
        %v267 = vlaneseq
        %v268 = vshrl.u32 %v267, 7
        %v269 = vsub.s32 3, %v268
        %v270 = vrot.slane %v253, %v269
        %v291 = vunpack.c.l.b16 %v227
        %v292 = vunpack.c.l.b16 %v228
        %v293 = vunpack.c.l.b16 %v229
        %v294 = vunpack.c.l.b16 %v230
        %v295 = vunpack.c.l.b16 %v231
        %v296 = vunpack.c.l.b16 %v232
        %v297 = vunpack.c.l.b16 %v233
        %v298 = vunpack.c.l.b16 %v234
        %v299 = vunpack.c.l.b16 %v235
        %v300 = vunpack.c.l.b16 %v236
        %v301 = vunpack.c.l.b16 %v237
        %v302 = vunpack.c.l.b16 %v238
        %v303 = vunpack.c.l.b16 %v239
        %v304 = vunpack.c.l.b16 %v240
        %v305 = vunpack.c.l.b16 %v241
        %v306 = vunpack.c.l.b16 %v242
        %v307 = vpack.c.b16 %v292, %v291
        %v308 = vpack.c.b16 %v294, %v293
        %v309 = vpack.c.b16 %v296, %v295
        %v310 = vpack.c.b16 %v298, %v297
        %v311 = vpack.c.b16 %v300, %v299
        %v312 = vpack.c.b16 %v302, %v301
        %v313 = vpack.c.b16 %v304, %v303
        %v314 = vpack.c.b16 %v306, %v305
        %v325 = vunpack.c.l.b16 %v243
        %v326 = vunpack.c.h.b16 %v243
        %v327 = vunpack.c.l.b16 %v244
        %v328 = vunpack.c.h.b16 %v244
        %v329 = vunpack.c.l.b16 %v245
        %v330 = vunpack.c.h.b16 %v245
        %v331 = vunpack.c.l.b16 %v246
        %v332 = vunpack.c.h.b16 %v246
        %v333 = vunpack.c.l.b16 %v247
        %v334 = vunpack.c.h.b16 %v247
        %v335 = vunpack.c.l.b16 %v248
        %v336 = vunpack.c.h.b16 %v248
        %v337 = vunpack.c.l.b16 %v249
        %v338 = vunpack.c.h.b16 %v249
        %v339 = vunpack.c.l.b16 %v250
        %v340 = vunpack.c.h.b16 %v250
        %v341 = vunpack.c.l.b16 %v251
        %v342 = vunpack.c.h.b16 %v251
        %v343 = vunpack.c.l.b16 %v252
        %v344 = vunpack.c.h.b16 %v252
        %v345 = vpack.c.b16 %v329, %v325
        %v346 = vpack.c.b16 %v330, %v326
        %v347 = vpack.c.b16 %v331, %v327
        %v348 = vpack.c.b16 %v332, %v328
        %v349 = vpack.c.b16 %v337, %v333
        %v350 = vpack.c.b16 %v338, %v334
        %v351 = vpack.c.b16 %v339, %v335
        %v352 = vpack.c.b16 %v340, %v336
        %v353 = vpack.c.b16 %v341, %v341
        %v354 = vpack.c.b16 %v342, %v342
        %v355 = vpack.c.b16 %v343, %v343
        %v356 = vpack.c.b16 %v344, %v344
        %vm365 = vcmask 293888
        %v367 = vsel %vm365, %v307, 0
        %v370 = vsel %vm365, %v308, 0
        %v373 = vsel %vm365, %v309, 0
        %v376 = vsel %vm365, %v310, 0
        %v379 = vsel %vm365, %v311, 0
        %v382 = vsel %vm365, %v312, 0
        %v385 = vsel %vm365, %v313, 0
        %v388 = vsel %vm365, %v314, 0
        %vm390 = vcmask 1041408
        %v392 = vsel %vm390, %v353, 0
        %v395 = vsel %vm390, %v354, 0
        %v398 = vsel %vm390, %v355, 0
        %v401 = vsel %vm390, %v356, 0
        %403 = vmatprep.subr.bf16.mxu0 %v346
        %404 = vmatpush1.bf16.msra.mxu0 %v345
        %405 = vmatprep.subr.bf16.mxu0 %v350
        %406 = vmatpush1.bf16.msra.mxu0 %v349
        %407 = vmatprep.subr.bf16.mxu0 %v395
        %408 = vmatpush1.bf16.msra.mxu0 %v392
        %409 = vmatprep.subr.bf16.mxu0 0
        %410 = vmatpush1.bf16.msra.mxu0 0
        %411 = vmatprep.subr.bf16.mxu0 0
        %412 = vmatpush1.bf16.msra.mxu0 0
        %413 = vmatprep.subr.bf16.mxu0 0
        %414 = vmatpush1.bf16.msra.mxu0 0
        %415 = vmatprep.subr.bf16.mxu0 0
        %416 = vmatpush1.bf16.msra.mxu0 0
        %417 = vmatprep.subr.bf16.mxu0 0
        %418 = vmatpush1.bf16.msra.mxu0 0
        %419 = vmatprep.subr.bf16.mxu0 0
        %420 = vmatpush1.bf16.msra.mxu0 0
        %421 = vmatprep.subr.bf16.mxu0 0
        %422 = vmatpush1.bf16.msra.mxu0 0
        %423 = vmatprep.subr.bf16.mxu0 0
        %424 = vmatpush1.bf16.msra.mxu0 0
        %425 = vmatprep.subr.bf16.mxu0 0
        %426 = vmatpush1.bf16.msra.mxu0 0
        %427 = vmatprep.subr.bf16.mxu0 0
        %428 = vmatpush1.bf16.msra.mxu0 0
        %429 = vmatprep.subr.bf16.mxu0 0
        %430 = vmatpush1.bf16.msra.mxu0 0
        %431 = vmatprep.subr.bf16.mxu0 0
        %432 = vmatpush1.bf16.msra.mxu0 0
        %433 = vmatprep.subr.bf16.mxu0 0
        %434 = vmatpush1.bf16.msra.mxu0 0
        %435 = vmatprep.mubr.bf16.mxu0 0
        %436 = vmatmul.mubr.bf16.gmra.mrb[0].mxu0 %v367
        %v437 = vpop.f32.mrb[0].mxu0
        %v438 = vadd.f32 %v258, %v437
        %v439 = vpop.f32.mrb[0].mxu0
        %v440 = vadd.f32 %v262, %v439
        %v441 = vpop.f32.mrb[0].mxu0
        %v442 = vadd.f32 %v258, %v441
        %v443 = vpop.f32.mrb[0].mxu0
        %v444 = vadd.f32 %v262, %v443
        %445 = vmatprep.mubr.bf16.mxu0 0
        %446 = vmatmul.mubr.bf16.gmra.mrb[0].mxu0 %v370
        %v447 = vpop.f32.mrb[0].mxu0
        %v448 = vadd.f32 %v258, %v447
        %v449 = vpop.f32.mrb[0].mxu0
        %v450 = vadd.f32 %v262, %v449
        %v451 = vpop.f32.mrb[0].mxu0
        %v452 = vadd.f32 %v258, %v451
        %v453 = vpop.f32.mrb[0].mxu0
        %v454 = vadd.f32 %v262, %v453
        %455 = vmatprep.mubr.bf16.mxu0 0
        %456 = vmatmul.mubr.bf16.gmra.mrb[0].mxu0 %v373
        %v457 = vpop.f32.mrb[0].mxu0
        %v458 = vadd.f32 %v258, %v457
        %v459 = vpop.f32.mrb[0].mxu0
        %v460 = vadd.f32 %v262, %v459
        %v461 = vpop.f32.mrb[0].mxu0
        %v462 = vadd.f32 %v258, %v461
        %v463 = vpop.f32.mrb[0].mxu0
        %v464 = vadd.f32 %v262, %v463
        %465 = vmatprep.mubr.bf16.mxu0 0
        %466 = vmatmul.mubr.bf16.gmra.mrb[0].mxu0 %v376
        %v467 = vpop.f32.mrb[0].mxu0
        %v468 = vadd.f32 %v258, %v467
        %v469 = vpop.f32.mrb[0].mxu0
        %v470 = vadd.f32 %v262, %v469
        %v471 = vpop.f32.mrb[0].mxu0
        %v472 = vadd.f32 %v258, %v471
        %v473 = vpop.f32.mrb[0].mxu0
        %v474 = vadd.f32 %v262, %v473
        %475 = vmatprep.mubr.bf16.mxu0 0
        %476 = vmatmul.mubr.bf16.gmra.mrb[0].mxu0 %v379
        %v477 = vpop.f32.mrb[0].mxu0
        %v478 = vadd.f32 %v258, %v477
        %v479 = vpop.f32.mrb[0].mxu0
        %v480 = vadd.f32 %v262, %v479
        %v481 = vpop.f32.mrb[0].mxu0
        %v482 = vadd.f32 %v258, %v481
        %v483 = vpop.f32.mrb[0].mxu0
        %v484 = vadd.f32 %v262, %v483
        %485 = vmatprep.mubr.bf16.mxu0 0
        %486 = vmatmul.mubr.bf16.gmra.mrb[0].mxu0 %v382
        %v487 = vpop.f32.mrb[0].mxu0
        %v488 = vadd.f32 %v258, %v487
        %v489 = vpop.f32.mrb[0].mxu0
        %v490 = vadd.f32 %v262, %v489
        %v491 = vpop.f32.mrb[0].mxu0
        %v492 = vadd.f32 %v258, %v491
        %v493 = vpop.f32.mrb[0].mxu0
        %v494 = vadd.f32 %v262, %v493
        %495 = vmatprep.mubr.bf16.mxu0 0
        %496 = vmatmul.mubr.bf16.gmra.mrb[0].mxu0 %v385
        %v497 = vpop.f32.mrb[0].mxu0
        %v498 = vadd.f32 %v258, %v497
        %v499 = vpop.f32.mrb[0].mxu0
        %v500 = vadd.f32 %v262, %v499
        %v501 = vpop.f32.mrb[0].mxu0
        %v502 = vadd.f32 %v258, %v501
        %v503 = vpop.f32.mrb[0].mxu0
        %v504 = vadd.f32 %v262, %v503
        %505 = vmatprep.mubr.bf16.mxu0 0
        %506 = vmatmul.mubr.bf16.gmra.mrb[0].mxu0 %v388
        %v507 = vpop.f32.mrb[0].mxu0
        %v508 = vadd.f32 %v258, %v507
        %v509 = vpop.f32.mrb[0].mxu0
        %v510 = vadd.f32 %v262, %v509
        %v511 = vpop.f32.mrb[0].mxu0
        %v512 = vadd.f32 %v258, %v511
        %v513 = vpop.f32.mrb[0].mxu0
        %v514 = vadd.f32 %v262, %v513
        %515 = vdwg.mxu0
        %516 = vmatprep.subr.bf16.mxu0 %v348
        %517 = vmatpush1.bf16.msra.mxu0 %v347
        %518 = vmatprep.subr.bf16.mxu0 %v352
        %519 = vmatpush1.bf16.msra.mxu0 %v351
        %520 = vmatprep.subr.bf16.mxu0 %v401
        %521 = vmatpush1.bf16.msra.mxu0 %v398
        %522 = vmatprep.subr.bf16.mxu0 0
        %523 = vmatpush1.bf16.msra.mxu0 0
        %524 = vmatprep.subr.bf16.mxu0 0
        %525 = vmatpush1.bf16.msra.mxu0 0
        %526 = vmatprep.subr.bf16.mxu0 0
        %527 = vmatpush1.bf16.msra.mxu0 0
        %528 = vmatprep.subr.bf16.mxu0 0
        %529 = vmatpush1.bf16.msra.mxu0 0
        %530 = vmatprep.subr.bf16.mxu0 0
        %531 = vmatpush1.bf16.msra.mxu0 0
        %532 = vmatprep.subr.bf16.mxu0 0
        %533 = vmatpush1.bf16.msra.mxu0 0
        %534 = vmatprep.subr.bf16.mxu0 0
        %535 = vmatpush1.bf16.msra.mxu0 0
        %536 = vmatprep.subr.bf16.mxu0 0
        %537 = vmatpush1.bf16.msra.mxu0 0
        %538 = vmatprep.subr.bf16.mxu0 0
        %539 = vmatpush1.bf16.msra.mxu0 0
        %540 = vmatprep.subr.bf16.mxu0 0
        %541 = vmatpush1.bf16.msra.mxu0 0
        %542 = vmatprep.subr.bf16.mxu0 0
        %543 = vmatpush1.bf16.msra.mxu0 0
        %544 = vmatprep.subr.bf16.mxu0 0
        %545 = vmatpush1.bf16.msra.mxu0 0
        %546 = vmatprep.subr.bf16.mxu0 0
        %547 = vmatpush1.bf16.msra.mxu0 0
        %548 = vmatprep.mubr.bf16.mxu0 0
        %549 = vmatmul.mubr.bf16.gmra.mrb[0].mxu0 %v367
        %v550 = vpop.f32.mrb[0].mxu0
        %v551 = vadd.f32 %v266, %v550
        %v552 = vpop.f32.mrb[0].mxu0
        %v553 = vadd.f32 %v270, %v552
        %v554 = vpop.f32.mrb[0].mxu0
        %v555 = vadd.f32 %v266, %v554
        %v556 = vpop.f32.mrb[0].mxu0
        %v557 = vadd.f32 %v270, %v556
        %558 = vmatprep.mubr.bf16.mxu0 0
        %559 = vmatmul.mubr.bf16.gmra.mrb[0].mxu0 %v370
        %v560 = vpop.f32.mrb[0].mxu0
        %v561 = vadd.f32 %v266, %v560
        %v562 = vpop.f32.mrb[0].mxu0
        %v563 = vadd.f32 %v270, %v562
        %v564 = vpop.f32.mrb[0].mxu0
        %v565 = vadd.f32 %v266, %v564
        %v566 = vpop.f32.mrb[0].mxu0
        %v567 = vadd.f32 %v270, %v566
        %568 = vmatprep.mubr.bf16.mxu0 0
        %569 = vmatmul.mubr.bf16.gmra.mrb[0].mxu0 %v373
        %v570 = vpop.f32.mrb[0].mxu0
        %v571 = vadd.f32 %v266, %v570
        %v572 = vpop.f32.mrb[0].mxu0
        %v573 = vadd.f32 %v270, %v572
        %v574 = vpop.f32.mrb[0].mxu0
        %v575 = vadd.f32 %v266, %v574
        %v576 = vpop.f32.mrb[0].mxu0
        %v577 = vadd.f32 %v270, %v576
        %578 = vmatprep.mubr.bf16.mxu0 0
        %579 = vmatmul.mubr.bf16.gmra.mrb[0].mxu0 %v376
        %v580 = vpop.f32.mrb[0].mxu0
        %v581 = vadd.f32 %v266, %v580
        %v582 = vpop.f32.mrb[0].mxu0
        %v583 = vadd.f32 %v270, %v582
        %v584 = vpop.f32.mrb[0].mxu0
        %v585 = vadd.f32 %v266, %v584
        %v586 = vpop.f32.mrb[0].mxu0
        %v587 = vadd.f32 %v270, %v586
        %588 = vmatprep.mubr.bf16.mxu0 0
        %589 = vmatmul.mubr.bf16.gmra.mrb[0].mxu0 %v379
        %v590 = vpop.f32.mrb[0].mxu0
        %v591 = vadd.f32 %v266, %v590
        %v592 = vpop.f32.mrb[0].mxu0
        %v593 = vadd.f32 %v270, %v592
        %v594 = vpop.f32.mrb[0].mxu0
        %v595 = vadd.f32 %v266, %v594
        %v596 = vpop.f32.mrb[0].mxu0
        %v597 = vadd.f32 %v270, %v596
        %598 = vmatprep.mubr.bf16.mxu0 0
        %599 = vmatmul.mubr.bf16.gmra.mrb[0].mxu0 %v382
        %v600 = vpop.f32.mrb[0].mxu0
        %v601 = vadd.f32 %v266, %v600
        %v602 = vpop.f32.mrb[0].mxu0
        %v603 = vadd.f32 %v270, %v602
        %v604 = vpop.f32.mrb[0].mxu0
        %v605 = vadd.f32 %v266, %v604
        %v606 = vpop.f32.mrb[0].mxu0
        %v607 = vadd.f32 %v270, %v606
        %608 = vmatprep.mubr.bf16.mxu0 0
        %609 = vmatmul.mubr.bf16.gmra.mrb[0].mxu0 %v385
        %v610 = vpop.f32.mrb[0].mxu0
        %v611 = vadd.f32 %v266, %v610
        %v612 = vpop.f32.mrb[0].mxu0
        %v613 = vadd.f32 %v270, %v612
        %v614 = vpop.f32.mrb[0].mxu0
        %v615 = vadd.f32 %v266, %v614
        %v616 = vpop.f32.mrb[0].mxu0
        %v617 = vadd.f32 %v270, %v616
        %618 = vmatprep.mubr.bf16.mxu0 0
        %619 = vmatmul.mubr.bf16.gmra.mrb[0].mxu0 %v388
        %v620 = vpop.f32.mrb[0].mxu0
        %v621 = vadd.f32 %v266, %v620
        %v622 = vpop.f32.mrb[0].mxu0
        %v623 = vadd.f32 %v270, %v622
        %v624 = vpop.f32.mrb[0].mxu0
        %v625 = vadd.f32 %v266, %v624
        %v626 = vpop.f32.mrb[0].mxu0
        %v627 = vadd.f32 %v270, %v626
        %628 = vdwg.mxu0
        %v629 = vmax.f32 %v438, 0.0
        %v630 = vmax.f32 %v440, 0.0
        %v631 = vmax.f32 %v551, 0.0
        %v632 = vmax.f32 %v553, 0.0
        %v633 = vmax.f32 %v442, 0.0
        %v634 = vmax.f32 %v444, 0.0
        %v635 = vmax.f32 %v555, 0.0
        %v636 = vmax.f32 %v557, 0.0
        %v637 = vmax.f32 %v448, 0.0
        %v638 = vmax.f32 %v450, 0.0
        %v639 = vmax.f32 %v561, 0.0
        %v640 = vmax.f32 %v563, 0.0
        %v641 = vmax.f32 %v452, 0.0
        %v642 = vmax.f32 %v454, 0.0
        %v643 = vmax.f32 %v565, 0.0
        %v644 = vmax.f32 %v567, 0.0
        %v645 = vmax.f32 %v458, 0.0
        %v646 = vmax.f32 %v460, 0.0
        %v647 = vmax.f32 %v571, 0.0
        %v648 = vmax.f32 %v573, 0.0
        %v649 = vmax.f32 %v462, 0.0
        %v650 = vmax.f32 %v464, 0.0
        %v651 = vmax.f32 %v575, 0.0
        %v652 = vmax.f32 %v577, 0.0
        %v653 = vmax.f32 %v468, 0.0
        %v654 = vmax.f32 %v470, 0.0
        %v655 = vmax.f32 %v581, 0.0
        %v656 = vmax.f32 %v583, 0.0
        %v657 = vmax.f32 %v472, 0.0
        %v658 = vmax.f32 %v474, 0.0
        %v659 = vmax.f32 %v585, 0.0
        %v660 = vmax.f32 %v587, 0.0
        %v661 = vmax.f32 %v478, 0.0
        %v662 = vmax.f32 %v480, 0.0
        %v663 = vmax.f32 %v591, 0.0
        %v664 = vmax.f32 %v593, 0.0
        %v665 = vmax.f32 %v482, 0.0
        %v666 = vmax.f32 %v484, 0.0
        %v667 = vmax.f32 %v595, 0.0
        %v668 = vmax.f32 %v597, 0.0
        %v669 = vmax.f32 %v488, 0.0
        %v670 = vmax.f32 %v490, 0.0
        %v671 = vmax.f32 %v601, 0.0
        %v672 = vmax.f32 %v603, 0.0
        %v673 = vmax.f32 %v492, 0.0
        %v674 = vmax.f32 %v494, 0.0
        %v675 = vmax.f32 %v605, 0.0
        %v676 = vmax.f32 %v607, 0.0
        %v677 = vmax.f32 %v498, 0.0
        %v678 = vmax.f32 %v500, 0.0
        %v679 = vmax.f32 %v611, 0.0
        %v680 = vmax.f32 %v613, 0.0
        %v681 = vmax.f32 %v502, 0.0
        %v682 = vmax.f32 %v504, 0.0
        %v683 = vmax.f32 %v615, 0.0
        %v684 = vmax.f32 %v617, 0.0
        %v685 = vmax.f32 %v508, 0.0
        %v686 = vmax.f32 %v510, 0.0
        %v687 = vmax.f32 %v621, 0.0
        %v688 = vmax.f32 %v623, 0.0
        %v689 = vmax.f32 %v512, 0.0
        %v690 = vmax.f32 %v514, 0.0
        %v691 = vmax.f32 %v625, 0.0
        %v692 = vmax.f32 %v627, 0.0
        %v693 = vpack.c.bf16 %v633, %v629
        %v694 = vpack.c.bf16 %v634, %v630
        %v695 = vpack.c.bf16 %v635, %v631
        %v696 = vpack.c.bf16 %v636, %v632
        %v697 = vpack.c.bf16 %v641, %v637
        %v698 = vpack.c.bf16 %v642, %v638
        %v699 = vpack.c.bf16 %v643, %v639
        %v700 = vpack.c.bf16 %v644, %v640
        %v701 = vpack.c.bf16 %v649, %v645
        %v702 = vpack.c.bf16 %v650, %v646
        %v703 = vpack.c.bf16 %v651, %v647
        %v704 = vpack.c.bf16 %v652, %v648
        %v705 = vpack.c.bf16 %v657, %v653
        %v706 = vpack.c.bf16 %v658, %v654
        %v707 = vpack.c.bf16 %v659, %v655
        %v708 = vpack.c.bf16 %v660, %v656
        %v709 = vpack.c.bf16 %v665, %v661
        %v710 = vpack.c.bf16 %v666, %v662
        %v711 = vpack.c.bf16 %v667, %v663
        %v712 = vpack.c.bf16 %v668, %v664
        %v713 = vpack.c.bf16 %v673, %v669
        %v714 = vpack.c.bf16 %v674, %v670
        %v715 = vpack.c.bf16 %v675, %v671
        %v716 = vpack.c.bf16 %v676, %v672
        %v717 = vpack.c.bf16 %v681, %v677
        %v718 = vpack.c.bf16 %v682, %v678
        %v719 = vpack.c.bf16 %v683, %v679
        %v720 = vpack.c.bf16 %v684, %v680
        %v721 = vpack.c.bf16 %v689, %v685
        %v722 = vpack.c.bf16 %v690, %v686
        %v723 = vpack.c.bf16 %v691, %v687
        %v724 = vpack.c.bf16 %v692, %v688
        %v725 = vld [vmem:[%s3] sm:$0xf]
        %v726 = vld [vmem:[%s3 + $0x4] sm:$0xf]
        %v727 = vld [vmem:[%s3 + $0x8] sm:$0xf]
        %v728 = vld [vmem:[%s3 + $0xc] sm:$0xf]
        %v729 = vld [vmem:[%s3 + $0x10] sm:$0xf]
        %v730 = vld [vmem:[%s3 + $0x14] sm:$0xf]
        %v731 = vld [vmem:[%s3 + $0x18] sm:$0xf]
        %v732 = vld [vmem:[%s3 + $0x1c] sm:$0xf]
        %v733 = vld [vmem:[%s3 + $0x20] sm:$0xf]
        %v734 = vld [vmem:[%s3 + $0x24] sm:$0xf]
        %v735 = vld [vmem:[%s3 + $0x28] sm:$0xf]
        %v736 = vld [vmem:[%s3 + $0x2c] sm:$0xf]
        %v737 = vld [vmem:[%s3 + $0x30] sm:$0xf]
        %v738 = vld [vmem:[%s3 + $0x34] sm:$0xf]
        %v739 = vld [vmem:[%s3 + $0x38] sm:$0xf]
        %v740 = vld [vmem:[%s3 + $0x3c] sm:$0xf]
        %v741 = vld [vmem:[%s3 + $0x40] sm:$0xf]
        %v742 = vld [vmem:[%s3 + $0x44] sm:$0xf]
        %v743 = vld [vmem:[%s3 + $0x48] sm:$0xf]
        %v744 = vld [vmem:[%s3 + $0x4c] sm:$0xf]
        %v745 = vld [vmem:[%s3 + $0x50] sm:$0xf]
        %v746 = vld [vmem:[%s3 + $0x54] sm:$0xf]
        %v747 = vld [vmem:[%s3 + $0x58] sm:$0xf]
        %v748 = vld [vmem:[%s3 + $0x5c] sm:$0xf]
        %v749 = vld [vmem:[%s3 + $0x60] sm:$0xf]
        %v750 = vld [vmem:[%s3 + $0x64] sm:$0xf]
        %v751 = vld [vmem:[%s3 + $0x68] sm:$0xf]
        %v752 = vld [vmem:[%s3 + $0x6c] sm:$0xf]
        %v753 = vld [vmem:[%s3 + $0x70] sm:$0xf]
        %v754 = vld [vmem:[%s3 + $0x74] sm:$0xf]
        %v755 = vld [vmem:[%s3 + $0x78] sm:$0xf]
        %v756 = vld [vmem:[%s3 + $0x7c] sm:$0xf]
        %v757 = vld [vmem:[%s3 + $0x80] sm:$0xf]
        %v758 = vld [vmem:[%s3 + $0x84] sm:$0xf]
        %v759 = vld [vmem:[%s3 + $0x88] sm:$0xf]
        %v760 = vld [vmem:[%s3 + $0x8c] sm:$0xf]
        %v761 = vld [vmem:[%s3 + $0x90] sm:$0xf]
        %v762 = vld [vmem:[%s3 + $0x94] sm:$0xf]
        %v763 = vld [vmem:[%s3 + $0x98] sm:$0xf]
        %v764 = vld [vmem:[%s3 + $0x9c] sm:$0xf]
        %v765 = vld [vmem:[%s3 + $0xa0] sm:$0xf]
        %v766 = vld [vmem:[%s3 + $0xa4] sm:$0xf]
        %v767 = vld [vmem:[%s3 + $0xa8] sm:$0xf]
        %v768 = vld [vmem:[%s3 + $0xac] sm:$0xf]
        %v769 = vld [vmem:[%s3 + $0xb0] sm:$0xf]
        %v770 = vld [vmem:[%s3 + $0xb4] sm:$0xf]
        %v771 = vld [vmem:[%s3 + $0xb8] sm:$0xf]
        %v772 = vld [vmem:[%s3 + $0xbc] sm:$0xf]
        %v773 = vld [vmem:[%s3 + $0xc0] sm:$0xf]
        %v774 = vld [vmem:[%s3 + $0xc4] sm:$0xf]
        %v775 = vld [vmem:[%s3 + $0xc8] sm:$0xf]
        %v776 = vld [vmem:[%s3 + $0xcc] sm:$0xf]
        %v777 = vld [vmem:[%s3 + $0xd0] sm:$0xf]
        %v778 = vld [vmem:[%s3 + $0xd4] sm:$0xf]
        %v779 = vld [vmem:[%s3 + $0xd8] sm:$0xf]
        %v780 = vld [vmem:[%s3 + $0xdc] sm:$0xf]
        %v781 = vld [vmem:[%s3 + $0xe0] sm:$0xf]
        %v782 = vld [vmem:[%s3 + $0xe4] sm:$0xf]
        %v783 = vld [vmem:[%s3 + $0xe8] sm:$0xf]
        %v784 = vld [vmem:[%s3 + $0xec] sm:$0xf]
        %v785 = vld [vmem:[%s3 + $0xf0] sm:$0xf]
        %v786 = vld [vmem:[%s3 + $0xf4] sm:$0xf]
        %v787 = vld [vmem:[%s3 + $0xf8] sm:$0xf]
        %v788 = vld [vmem:[%s3 + $0xfc] sm:$0xf]
        %v789 = vld [vmem:[%s4] sm:$0x1]
        %v791 = vlaneseq
        %v792 = vshrl.u32 %v791, 7
        %v793 = vsub.s32 0, %v792
        %v794 = vrot.slane %v789, %v793
        %v860 = vunpack.c.l.b16 %v725
        %v861 = vunpack.c.l.b16 %v726
        %v862 = vunpack.c.l.b16 %v727
        %v863 = vunpack.c.l.b16 %v728
        %v864 = vunpack.c.l.b16 %v729
        %v865 = vunpack.c.l.b16 %v730
        %v866 = vunpack.c.l.b16 %v731
        %v867 = vunpack.c.l.b16 %v732
        %v868 = vunpack.c.l.b16 %v733
        %v869 = vunpack.c.l.b16 %v734
        %v870 = vunpack.c.l.b16 %v735
        %v871 = vunpack.c.l.b16 %v736
        %v872 = vunpack.c.l.b16 %v737
        %v873 = vunpack.c.l.b16 %v738
        %v874 = vunpack.c.l.b16 %v739
        %v875 = vunpack.c.l.b16 %v740
        %v876 = vunpack.c.l.b16 %v741
        %v877 = vunpack.c.l.b16 %v742
        %v878 = vunpack.c.l.b16 %v743
        %v879 = vunpack.c.l.b16 %v744
        %v880 = vunpack.c.l.b16 %v745
        %v881 = vunpack.c.l.b16 %v746
        %v882 = vunpack.c.l.b16 %v747
        %v883 = vunpack.c.l.b16 %v748
        %v884 = vunpack.c.l.b16 %v749
        %v885 = vunpack.c.l.b16 %v750
        %v886 = vunpack.c.l.b16 %v751
        %v887 = vunpack.c.l.b16 %v752
        %v888 = vunpack.c.l.b16 %v753
        %v889 = vunpack.c.l.b16 %v754
        %v890 = vunpack.c.l.b16 %v755
        %v891 = vunpack.c.l.b16 %v756
        %v892 = vunpack.c.l.b16 %v757
        %v893 = vunpack.c.l.b16 %v758
        %v894 = vunpack.c.l.b16 %v759
        %v895 = vunpack.c.l.b16 %v760
        %v896 = vunpack.c.l.b16 %v761
        %v897 = vunpack.c.l.b16 %v762
        %v898 = vunpack.c.l.b16 %v763
        %v899 = vunpack.c.l.b16 %v764
        %v900 = vunpack.c.l.b16 %v765
        %v901 = vunpack.c.l.b16 %v766
        %v902 = vunpack.c.l.b16 %v767
        %v903 = vunpack.c.l.b16 %v768
        %v904 = vunpack.c.l.b16 %v769
        %v905 = vunpack.c.l.b16 %v770
        %v906 = vunpack.c.l.b16 %v771
        %v907 = vunpack.c.l.b16 %v772
        %v908 = vunpack.c.l.b16 %v773
        %v909 = vunpack.c.l.b16 %v774
        %v910 = vunpack.c.l.b16 %v775
        %v911 = vunpack.c.l.b16 %v776
        %v912 = vunpack.c.l.b16 %v777
        %v913 = vunpack.c.l.b16 %v778
        %v914 = vunpack.c.l.b16 %v779
        %v915 = vunpack.c.l.b16 %v780
        %v916 = vunpack.c.l.b16 %v781
        %v917 = vunpack.c.l.b16 %v782
        %v918 = vunpack.c.l.b16 %v783
        %v919 = vunpack.c.l.b16 %v784
        %v920 = vunpack.c.l.b16 %v785
        %v921 = vunpack.c.l.b16 %v786
        %v922 = vunpack.c.l.b16 %v787
        %v923 = vunpack.c.l.b16 %v788
        %v924 = vpack.c.b16 %v861, %v860
        %v925 = vpack.c.b16 %v863, %v862
        %v926 = vpack.c.b16 %v865, %v864
        %v927 = vpack.c.b16 %v867, %v866
        %v928 = vpack.c.b16 %v869, %v868
        %v929 = vpack.c.b16 %v871, %v870
        %v930 = vpack.c.b16 %v873, %v872
        %v931 = vpack.c.b16 %v875, %v874
        %v932 = vpack.c.b16 %v877, %v876
        %v933 = vpack.c.b16 %v879, %v878
        %v934 = vpack.c.b16 %v881, %v880
        %v935 = vpack.c.b16 %v883, %v882
        %v936 = vpack.c.b16 %v885, %v884
        %v937 = vpack.c.b16 %v887, %v886
        %v938 = vpack.c.b16 %v889, %v888
        %v939 = vpack.c.b16 %v891, %v890
        %v940 = vpack.c.b16 %v893, %v892
        %v941 = vpack.c.b16 %v895, %v894
        %v942 = vpack.c.b16 %v897, %v896
        %v943 = vpack.c.b16 %v899, %v898
        %v944 = vpack.c.b16 %v901, %v900
        %v945 = vpack.c.b16 %v903, %v902
        %v946 = vpack.c.b16 %v905, %v904
        %v947 = vpack.c.b16 %v907, %v906
        %v948 = vpack.c.b16 %v909, %v908
        %v949 = vpack.c.b16 %v911, %v910
        %v950 = vpack.c.b16 %v913, %v912
        %v951 = vpack.c.b16 %v915, %v914
        %v952 = vpack.c.b16 %v917, %v916
        %v953 = vpack.c.b16 %v919, %v918
        %v954 = vpack.c.b16 %v921, %v920
        %v955 = vpack.c.b16 %v923, %v922
        %988 = vmatprep.subr.bf16.mxu0 0
        %989 = vmatpush1.bf16.msra.mxu0 %v924
        %990 = vmatprep.subr.bf16.mxu0 0
        %991 = vmatpush1.bf16.msra.mxu0 %v925
        %992 = vmatprep.subr.bf16.mxu0 0
        %993 = vmatpush1.bf16.msra.mxu0 %v926
        %994 = vmatprep.subr.bf16.mxu0 0
        %995 = vmatpush1.bf16.msra.mxu0 %v927
        %996 = vmatprep.subr.bf16.mxu0 0
        %997 = vmatpush1.bf16.msra.mxu0 %v928
        %998 = vmatprep.subr.bf16.mxu0 0
        %999 = vmatpush1.bf16.msra.mxu0 %v929
        %1000 = vmatprep.subr.bf16.mxu0 0
        %1001 = vmatpush1.bf16.msra.mxu0 %v930
        %1002 = vmatprep.subr.bf16.mxu0 0
        %1003 = vmatpush1.bf16.msra.mxu0 %v931
        %1004 = vmatprep.subr.bf16.mxu0 0
        %1005 = vmatpush1.bf16.msra.mxu0 %v932
        %1006 = vmatprep.subr.bf16.mxu0 0
        %1007 = vmatpush1.bf16.msra.mxu0 %v933
        %1008 = vmatprep.subr.bf16.mxu0 0
        %1009 = vmatpush1.bf16.msra.mxu0 %v934
        %1010 = vmatprep.subr.bf16.mxu0 0
        %1011 = vmatpush1.bf16.msra.mxu0 %v935
        %1012 = vmatprep.subr.bf16.mxu0 0
        %1013 = vmatpush1.bf16.msra.mxu0 %v936
        %1014 = vmatprep.subr.bf16.mxu0 0
        %1015 = vmatpush1.bf16.msra.mxu0 %v937
        %1016 = vmatprep.subr.bf16.mxu0 0
        %1017 = vmatpush1.bf16.msra.mxu0 %v938
        %1018 = vmatprep.subr.bf16.mxu0 0
        %1019 = vmatpush1.bf16.msra.mxu0 %v939
        %1020 = vmatprep.mubr.bf16.mxu0 %v694
        %1021 = vmatmul.mubr.bf16.gmra.mrb[0].mxu0 %v693
        %v1022 = vpop.f32.mrb[0].mxu0
        %v1023 = vadd.f32 %v794, %v1022
        %v1024 = vpop.f32.mrb[0].mxu0
        %v1025 = vpop.f32.mrb[0].mxu0
        %v1026 = vadd.f32 %v794, %v1025
        %v1027 = vpop.f32.mrb[0].mxu0
        %1028 = vmatprep.mubr.bf16.mxu0 %v698
        %1029 = vmatmul.mubr.bf16.gmra.mrb[0].mxu0 %v697
        %v1030 = vpop.f32.mrb[0].mxu0
        %v1031 = vadd.f32 %v794, %v1030
        %v1032 = vpop.f32.mrb[0].mxu0
        %v1033 = vpop.f32.mrb[0].mxu0
        %v1034 = vadd.f32 %v794, %v1033
        %v1035 = vpop.f32.mrb[0].mxu0
        %1036 = vmatprep.mubr.bf16.mxu0 %v702
        %1037 = vmatmul.mubr.bf16.gmra.mrb[0].mxu0 %v701
        %v1038 = vpop.f32.mrb[0].mxu0
        %v1039 = vadd.f32 %v794, %v1038
        %v1040 = vpop.f32.mrb[0].mxu0
        %v1041 = vpop.f32.mrb[0].mxu0
        %v1042 = vadd.f32 %v794, %v1041
        %v1043 = vpop.f32.mrb[0].mxu0
        %1044 = vmatprep.mubr.bf16.mxu0 %v706
        %1045 = vmatmul.mubr.bf16.gmra.mrb[0].mxu0 %v705
        %v1046 = vpop.f32.mrb[0].mxu0
        %v1047 = vadd.f32 %v794, %v1046
        %v1048 = vpop.f32.mrb[0].mxu0
        %v1049 = vpop.f32.mrb[0].mxu0
        %v1050 = vadd.f32 %v794, %v1049
        %v1051 = vpop.f32.mrb[0].mxu0
        %1052 = vmatprep.mubr.bf16.mxu0 %v710
        %1053 = vmatmul.mubr.bf16.gmra.mrb[0].mxu0 %v709
        %v1054 = vpop.f32.mrb[0].mxu0
        %v1055 = vadd.f32 %v794, %v1054
        %v1056 = vpop.f32.mrb[0].mxu0
        %v1057 = vpop.f32.mrb[0].mxu0
        %v1058 = vadd.f32 %v794, %v1057
        %v1059 = vpop.f32.mrb[0].mxu0
        %1060 = vmatprep.mubr.bf16.mxu0 %v714
        %1061 = vmatmul.mubr.bf16.gmra.mrb[0].mxu0 %v713
        %v1062 = vpop.f32.mrb[0].mxu0
        %v1063 = vadd.f32 %v794, %v1062
        %v1064 = vpop.f32.mrb[0].mxu0
        %v1065 = vpop.f32.mrb[0].mxu0
        %v1066 = vadd.f32 %v794, %v1065
        %v1067 = vpop.f32.mrb[0].mxu0
        %1068 = vmatprep.mubr.bf16.mxu0 %v718
        %1069 = vmatmul.mubr.bf16.gmra.mrb[0].mxu0 %v717
        %v1070 = vpop.f32.mrb[0].mxu0
        %v1071 = vadd.f32 %v794, %v1070
        %v1072 = vpop.f32.mrb[0].mxu0
        %v1073 = vpop.f32.mrb[0].mxu0
        %v1074 = vadd.f32 %v794, %v1073
        %v1075 = vpop.f32.mrb[0].mxu0
        %1076 = vmatprep.mubr.bf16.mxu0 %v722
        %1077 = vmatmul.mubr.bf16.gmra.mrb[0].mxu0 %v721
        %v1078 = vpop.f32.mrb[0].mxu0
        %v1079 = vadd.f32 %v794, %v1078
        %v1080 = vpop.f32.mrb[0].mxu0
        %v1081 = vpop.f32.mrb[0].mxu0
        %v1082 = vadd.f32 %v794, %v1081
        %v1083 = vpop.f32.mrb[0].mxu0
        %1084 = vdwg.mxu0
        %1085 = vmatprep.subr.bf16.mxu0 0
        %1086 = vmatpush1.bf16.msra.mxu0 %v940
        %1087 = vmatprep.subr.bf16.mxu0 0
        %1088 = vmatpush1.bf16.msra.mxu0 %v941
        %1089 = vmatprep.subr.bf16.mxu0 0
        %1090 = vmatpush1.bf16.msra.mxu0 %v942
        %1091 = vmatprep.subr.bf16.mxu0 0
        %1092 = vmatpush1.bf16.msra.mxu0 %v943
        %1093 = vmatprep.subr.bf16.mxu0 0
        %1094 = vmatpush1.bf16.msra.mxu0 %v944
        %1095 = vmatprep.subr.bf16.mxu0 0
        %1096 = vmatpush1.bf16.msra.mxu0 %v945
        %1097 = vmatprep.subr.bf16.mxu0 0
        %1098 = vmatpush1.bf16.msra.mxu0 %v946
        %1099 = vmatprep.subr.bf16.mxu0 0
        %1100 = vmatpush1.bf16.msra.mxu0 %v947
        %1101 = vmatprep.subr.bf16.mxu0 0
        %1102 = vmatpush1.bf16.msra.mxu0 %v948
        %1103 = vmatprep.subr.bf16.mxu0 0
        %1104 = vmatpush1.bf16.msra.mxu0 %v949
        %1105 = vmatprep.subr.bf16.mxu0 0
        %1106 = vmatpush1.bf16.msra.mxu0 %v950
        %1107 = vmatprep.subr.bf16.mxu0 0
        %1108 = vmatpush1.bf16.msra.mxu0 %v951
        %1109 = vmatprep.subr.bf16.mxu0 0
        %1110 = vmatpush1.bf16.msra.mxu0 %v952
        %1111 = vmatprep.subr.bf16.mxu0 0
        %1112 = vmatpush1.bf16.msra.mxu0 %v953
        %1113 = vmatprep.subr.bf16.mxu0 0
        %1114 = vmatpush1.bf16.msra.mxu0 %v954
        %1115 = vmatprep.subr.bf16.mxu0 0
        %1116 = vmatpush1.bf16.msra.mxu0 %v955
        %1117 = vmatprep.mubr.bf16.mxu0 %v696
        %1118 = vmatmul.mubr.bf16.gmra.mrb[0].mxu0 %v695
        %v1119 = vpop.f32.mrb[0].mxu0
        %v1120 = vadd.f32 %v1023, %v1119
        %v1121 = vpop.f32.mrb[0].mxu0
        %v1122 = vpop.f32.mrb[0].mxu0
        %v1123 = vadd.f32 %v1026, %v1122
        %v1124 = vpop.f32.mrb[0].mxu0
        %1125 = vmatprep.mubr.bf16.mxu0 %v700
        %1126 = vmatmul.mubr.bf16.gmra.mrb[0].mxu0 %v699
        %v1127 = vpop.f32.mrb[0].mxu0
        %v1128 = vadd.f32 %v1031, %v1127
        %v1129 = vpop.f32.mrb[0].mxu0
        %v1130 = vpop.f32.mrb[0].mxu0
        %v1131 = vadd.f32 %v1034, %v1130
        %v1132 = vpop.f32.mrb[0].mxu0
        %1133 = vmatprep.mubr.bf16.mxu0 %v704
        %1134 = vmatmul.mubr.bf16.gmra.mrb[0].mxu0 %v703
        %v1135 = vpop.f32.mrb[0].mxu0
        %v1136 = vadd.f32 %v1039, %v1135
        %v1137 = vpop.f32.mrb[0].mxu0
        %v1138 = vpop.f32.mrb[0].mxu0
        %v1139 = vadd.f32 %v1042, %v1138
        %v1140 = vpop.f32.mrb[0].mxu0
        %1141 = vmatprep.mubr.bf16.mxu0 %v708
        %1142 = vmatmul.mubr.bf16.gmra.mrb[0].mxu0 %v707
        %v1143 = vpop.f32.mrb[0].mxu0
        %v1144 = vadd.f32 %v1047, %v1143
        %v1145 = vpop.f32.mrb[0].mxu0
        %v1146 = vpop.f32.mrb[0].mxu0
        %v1147 = vadd.f32 %v1050, %v1146
        %v1148 = vpop.f32.mrb[0].mxu0
        %1149 = vmatprep.mubr.bf16.mxu0 %v712
        %1150 = vmatmul.mubr.bf16.gmra.mrb[0].mxu0 %v711
        %v1151 = vpop.f32.mrb[0].mxu0
        %v1152 = vadd.f32 %v1055, %v1151
        %v1153 = vpop.f32.mrb[0].mxu0
        %v1154 = vpop.f32.mrb[0].mxu0
        %v1155 = vadd.f32 %v1058, %v1154
        %v1156 = vpop.f32.mrb[0].mxu0
        %1157 = vmatprep.mubr.bf16.mxu0 %v716
        %1158 = vmatmul.mubr.bf16.gmra.mrb[0].mxu0 %v715
        %v1159 = vpop.f32.mrb[0].mxu0
        %v1160 = vadd.f32 %v1063, %v1159
        %v1161 = vpop.f32.mrb[0].mxu0
        %v1162 = vpop.f32.mrb[0].mxu0
        %v1163 = vadd.f32 %v1066, %v1162
        %v1164 = vpop.f32.mrb[0].mxu0
        %1165 = vmatprep.mubr.bf16.mxu0 %v720
        %1166 = vmatmul.mubr.bf16.gmra.mrb[0].mxu0 %v719
        %v1167 = vpop.f32.mrb[0].mxu0
        %v1168 = vadd.f32 %v1071, %v1167
        %v1169 = vpop.f32.mrb[0].mxu0
        %v1170 = vpop.f32.mrb[0].mxu0
        %v1171 = vadd.f32 %v1074, %v1170
        %v1172 = vpop.f32.mrb[0].mxu0
        %1173 = vmatprep.mubr.bf16.mxu0 %v724
        %1174 = vmatmul.mubr.bf16.gmra.mrb[0].mxu0 %v723
        %v1175 = vpop.f32.mrb[0].mxu0
        %v1176 = vadd.f32 %v1079, %v1175
        %v1177 = vpop.f32.mrb[0].mxu0
        %v1178 = vpop.f32.mrb[0].mxu0
        %v1179 = vadd.f32 %v1082, %v1178
        %v1180 = vpop.f32.mrb[0].mxu0
        %1181 = vdwg.mxu0
        %v1182 = vpack.c.bf16 %v1123, %v1120
        %v1183 = vpack.c.bf16 %v1131, %v1128
        %v1184 = vpack.c.bf16 %v1139, %v1136
        %v1185 = vpack.c.bf16 %v1147, %v1144
        %v1186 = vpack.c.bf16 %v1155, %v1152
        %v1187 = vpack.c.bf16 %v1163, %v1160
        %v1188 = vpack.c.bf16 %v1171, %v1168
        %v1189 = vpack.c.bf16 %v1179, %v1176
        %v1198 = vunpack.c.l.b16 %v1182
        %v1199 = vunpack.c.h.b16 %v1182
        %v1200 = vunpack.c.l.b16 %v1183
        %v1201 = vunpack.c.h.b16 %v1183
        %v1202 = vunpack.c.l.b16 %v1184
        %v1203 = vunpack.c.h.b16 %v1184
        %v1204 = vunpack.c.l.b16 %v1185
        %v1205 = vunpack.c.h.b16 %v1185
        %v1206 = vunpack.c.l.b16 %v1186
        %v1207 = vunpack.c.h.b16 %v1186
        %v1208 = vunpack.c.l.b16 %v1187
        %v1209 = vunpack.c.h.b16 %v1187
        %v1210 = vunpack.c.l.b16 %v1188
        %v1211 = vunpack.c.h.b16 %v1188
        %v1212 = vunpack.c.l.b16 %v1189
        %v1213 = vunpack.c.h.b16 %v1189
        %v1214 = vpack.c.b16 %v1198, %v1198
        %v1215 = vpack.c.b16 %v1199, %v1199
        %v1216 = vpack.c.b16 %v1200, %v1200
        %v1217 = vpack.c.b16 %v1201, %v1201
        %v1218 = vpack.c.b16 %v1202, %v1202
        %v1219 = vpack.c.b16 %v1203, %v1203
        %v1220 = vpack.c.b16 %v1204, %v1204
        %v1221 = vpack.c.b16 %v1205, %v1205
        %v1222 = vpack.c.b16 %v1206, %v1206
        %v1223 = vpack.c.b16 %v1207, %v1207
        %v1224 = vpack.c.b16 %v1208, %v1208
        %v1225 = vpack.c.b16 %v1209, %v1209
        %v1226 = vpack.c.b16 %v1210, %v1210
        %v1227 = vpack.c.b16 %v1211, %v1211
        %v1228 = vpack.c.b16 %v1212, %v1212
        %v1229 = vpack.c.b16 %v1213, %v1213
        %1246 = vst [vmem:[%s218] sm:$0xf] %v1214
        %1247 = vst [vmem:[%s218 + $0x4] sm:$0xf] %v1215
        %1248 = vst [vmem:[%s218 + $0x8] sm:$0xf] %v1216
        %1249 = vst [vmem:[%s218 + $0xc] sm:$0xf] %v1217
        %1250 = vst [vmem:[%s218 + $0x10] sm:$0xf] %v1218
        %1251 = vst [vmem:[%s218 + $0x14] sm:$0xf] %v1219
        %1252 = vst [vmem:[%s218 + $0x18] sm:$0xf] %v1220
        %1253 = vst [vmem:[%s218 + $0x1c] sm:$0xf] %v1221
        %1254 = vst [vmem:[%s218 + $0x20] sm:$0xf] %v1222
        %1255 = vst [vmem:[%s218 + $0x24] sm:$0xf] %v1223
        %1256 = vst [vmem:[%s218 + $0x28] sm:$0xf] %v1224
        %1257 = vst [vmem:[%s218 + $0x2c] sm:$0xf] %v1225
        %1258 = vst [vmem:[%s218 + $0x30] sm:$0xf] %v1226
        %1259 = vst [vmem:[%s218 + $0x34] sm:$0xf] %v1227
        %1260 = vst [vmem:[%s218 + $0x38] sm:$0xf] %v1228
        %1261 = vst [vmem:[%s218 + $0x3c] sm:$0xf] %v1229
        %s1262 = sand.u32 %s137, 1
        %s1263 = scalar_lea.sflag [#allocation3], %s1262
        %s1264 = sand.u32 %s137, 1
        %s1265 = smul.addr %s1264, 64
        %s1266 = scalar_lea.vmem [#allocation2], %s1265
        // Predicated region
        $region41: #{tpu_custom_call.1} parent=39 // pred_check
          %p1267 = pneg %p147
        $region42: #{tpu_custom_call.1} parent=39 // pred_check_branch
          %1269 = sbr.rel (%p1267) target = $region44
        $region43: #{tpu_custom_call.1} parent=39 // pred_region
          %s1270 = smul.u32 16, %s19
          %s1272 = ssub.s32 1024, 1024
          %1273 = vsyncadd %s1263, %s1272
          %s1274 = smul.addr %s1270, 64
          %s1275 = scalar_lea.hbm %s5, %s1274
          %s1276 = sshll.u32 %s1266, 4
          %s1277 = int_to_ptr.vmem [resolvable:$true] %s1276
          %1282 = dma.vmem_to_hbm [thread:$0]  %s1277, 1024, %s1275, %s1263, 64, 64, 4
        $region44: #{tpu_custom_call.1} parent=39 // pred_fallthru
          _
      $region40: #{tpu_custom_call.1} parent=5 // pred_fallthru
        _
      %p1283 = scmp.le.s32.totalorder 2, %s14
      // Predicated region
      $region45: #{tpu_custom_call.1} parent=5 // pred_check
        %p1284 = pneg %p1283
      $region46: #{tpu_custom_call.1} parent=5 // pred_check_branch
        %1286 = sbr.rel (%p1284) target = $region48
      $region47: #{tpu_custom_call.1} parent=5 // pred_region
        %s1287 = ssub.s32 %s14, 2
        // Predicated region
        $region49: #{tpu_custom_call.1} parent=47 // pred_check
          %p1288 = pneg %p153
        $region50: #{tpu_custom_call.1} parent=47 // pred_check_branch
          %1290 = sbr.rel (%p1288) target = $region52
        $region51: #{tpu_custom_call.1} parent=47 // pred_region
          %s1291 = sand.u32 %s138, 1
          %s1292 = scalar_lea.sflag [#allocation3], %s1291
          %s1293 = sand.u32 %s138, 1
          %s1294 = smul.addr %s1293, 64
          %s1295 = scalar_lea.vmem [#allocation2], %s1294
          %1296 = dma.done %s1292, 1024
        $region52: #{tpu_custom_call.1} parent=47 // pred_fallthru
          _
      $region48: #{tpu_custom_call.1} parent=5 // pred_fallthru
        _
    $region6: #{tpu_custom_call.1} parent=1 // loop_footer
      %s18 = sadd.s32 1, %s14
    $region7: #{tpu_custom_call.1} parent=1 // loop_footer_branch
      %13 = sbr.rel target = $region3
    $region8: #{tpu_custom_call.1} parent=1 // loop_exit
      _
    %1297 = vsyncpa [#allocation3], 1
    %s1298 = scalar_lea.sflag [#allocation3], 1
    %1299 = vsyncpa %s1298, 1

// kernel: tpu_custom_call.1
$region0: #{tpu_custom_call.1}
  #allocation0 [shape = 'u32[]', space=smem, size = 0x4, offset = 0x4, fixed_abs, tag = 'smem constant byte address 0x4 - core index']
  #allocation1 [shape = 'u32[144,128]{1,0:T(1,128)}', space=vmem, size = 0x12000, scoped, tag = 'internal scratch']
  %s0 = inlined_call_operand.vmem [shape: bf16[512,36], index: 0, kind: input, shape index: {}]
  %s1 = inlined_call_operand.vmem [shape: bf16[36,512], index: 1, kind: input, shape index: {}]
  %s2 = inlined_call_operand.vmem [shape: f32[1,512], index: 2, kind: input, shape index: {}]
  %s3 = inlined_call_operand.vmem [shape: bf16[512,128], index: 3, kind: input, shape index: {}]
  %s4 = inlined_call_operand.vmem [shape: f32[1,128], index: 4, kind: input, shape index: {}]
  %s5 = inlined_call_operand.hbm [shape: bf16[512,128], index: 5, kind: output, shape index: {}]
  %s6 = sld [smem:[#allocation0]]
  $region53: #{tpu_custom_call.1} parent=0
    _
  %s8 = ssub.s32 1, %s6
  %s9 = scalar_select 0, %s8, %s6
  $region1: #{tpu_custom_call.1} parent=0
    #allocation2 [shape = 'u8[65536]{0}', space=vmem, size = 0x10000, scoped, tag = 'output window, operand 0']
    #allocation3 [shape = 's32[2]{0}', space=sflag, size = 0x8, scoped, tag = 'scoped memory for tpu_custom_call.1']
    %10 = vsyncpa [#allocation3], 0
    %s11 = scalar_lea.sflag [#allocation3], 1
    %12 = vsyncpa %s11, 0
    loop: start=0, step=1, limit=6
    $region2: #{tpu_custom_call.1} parent=1 // loop_pre_header
      _
    $region3: #{tpu_custom_call.1} parent=1 // loop_header
      %s14 = sphi 0, %s18
      %p15 = scmp.ge.s32.totalorder %s14, 6
      %s24 = sphi 0, %s26
      %s27 = sphi 0, %s24
      %s28 = sphi 0, %s27
      %s44 = sphi 0, %s28
      %s48 = sphi 0, %s48
      %s50 = sphi 0, %s48
      %s51 = sphi 0, %s50
      %s65 = sphi 0, %s51
      %s69 = sphi 0, %s69
      %s71 = sphi 0, %s69
      %s72 = sphi 0, %s71
      %s86 = sphi 0, %s72
      %s90 = sphi 0, %s90
      %s92 = sphi 0, %s90
      %s93 = sphi 0, %s92
      %s107 = sphi 0, %s93
      %s111 = sphi 0, %s111
      %s113 = sphi 0, %s111
      %s114 = sphi 0, %s113
      %s128 = sphi 0, %s114
      %s134 = sphi 0, %s136
      %s137 = sphi 0, %s134
      %s138 = sphi 0, %s137
      %s154 = sphi 0, %s138
    $region4: #{tpu_custom_call.1} parent=1 // loop_header_branch
      %17 = sbr.rel (%p15) target = $region8
    $region5: #{tpu_custom_call.1} parent=1 // loop_body
      %s19 = ssub.s32 %s14, 1
      %s20 = ssub.s32 %s14, 2
      %s21 = sadd.s32 %s14, 1
      %s22 = ssub.s32 %s14, %s21
      %p23 = scmp.eq.s32.totalorder %s22, 0
      %s25 = sadd.s32 %s24, 1
      %s26 = scalar_select %p23, %s24, %s25
      %p29 = pneg %p23
      %p30 = scmp.eq.s32.totalorder %s14, 3
      %p31 = por %p29, %p30
      %p32 = scmp.ne.s32.totalorder %s24, %s27
      %p33 = scmp.eq.s32.totalorder %s14, 0
      %p34 = por %p32, %p33
      %p35 = scmp.ne.s32.totalorder %s24, %s27
      %p36 = scmp.eq.s32.totalorder %s19, 3
      %p37 = por %p35, %p36
      %p38 = scmp.ne.s32.totalorder %s27, %s28
      %p39 = scmp.eq.s32.totalorder %s19, 0
      %p40 = por %p38, %p39
      %p41 = scmp.ne.s32.totalorder %s27, %s28
      %p42 = scmp.eq.s32.totalorder %s20, 3
      %p43 = por %p41, %p42
      %p45 = scmp.ne.s32.totalorder %s28, %s44
      %p46 = scmp.eq.s32.totalorder %s20, 0
      %p47 = por %p45, %p46
      %s49 = sadd.s32 %s48, 1
      %p52 = scmp.eq.s32.totalorder %s14, 3
      %p53 = scmp.ne.s32.totalorder %s48, %s50
      %p54 = scmp.eq.s32.totalorder %s14, 0
      %p55 = por %p53, %p54
      %p56 = scmp.ne.s32.totalorder %s48, %s50
      %p57 = scmp.eq.s32.totalorder %s19, 3
      %p58 = por %p56, %p57
      %p59 = scmp.ne.s32.totalorder %s50, %s51
      %p60 = scmp.eq.s32.totalorder %s19, 0
      %p61 = por %p59, %p60
      %p62 = scmp.ne.s32.totalorder %s50, %s51
      %p63 = scmp.eq.s32.totalorder %s20, 3
      %p64 = por %p62, %p63
      %p66 = scmp.ne.s32.totalorder %s51, %s65
      %p67 = scmp.eq.s32.totalorder %s20, 0
      %p68 = por %p66, %p67
      %s70 = sadd.s32 %s69, 1
      %p73 = scmp.eq.s32.totalorder %s14, 3
      %p74 = scmp.ne.s32.totalorder %s69, %s71
      %p75 = scmp.eq.s32.totalorder %s14, 0
      %p76 = por %p74, %p75
      %p77 = scmp.ne.s32.totalorder %s69, %s71
      %p78 = scmp.eq.s32.totalorder %s19, 3
      %p79 = por %p77, %p78
      %p80 = scmp.ne.s32.totalorder %s71, %s72
      %p81 = scmp.eq.s32.totalorder %s19, 0
      %p82 = por %p80, %p81
      %p83 = scmp.ne.s32.totalorder %s71, %s72
      %p84 = scmp.eq.s32.totalorder %s20, 3
      %p85 = por %p83, %p84
      %p87 = scmp.ne.s32.totalorder %s72, %s86
      %p88 = scmp.eq.s32.totalorder %s20, 0
      %p89 = por %p87, %p88
      %s91 = sadd.s32 %s90, 1
      %p94 = scmp.eq.s32.totalorder %s14, 3
      %p95 = scmp.ne.s32.totalorder %s90, %s92
      %p96 = scmp.eq.s32.totalorder %s14, 0
      %p97 = por %p95, %p96
      %p98 = scmp.ne.s32.totalorder %s90, %s92
      %p99 = scmp.eq.s32.totalorder %s19, 3
      %p100 = por %p98, %p99
      %p101 = scmp.ne.s32.totalorder %s92, %s93
      %p102 = scmp.eq.s32.totalorder %s19, 0
      %p103 = por %p101, %p102
      %p104 = scmp.ne.s32.totalorder %s92, %s93
      %p105 = scmp.eq.s32.totalorder %s20, 3
      %p106 = por %p104, %p105
      %p108 = scmp.ne.s32.totalorder %s93, %s107
      %p109 = scmp.eq.s32.totalorder %s20, 0
      %p110 = por %p108, %p109
      %s112 = sadd.s32 %s111, 1
      %p115 = scmp.eq.s32.totalorder %s14, 3
      %p116 = scmp.ne.s32.totalorder %s111, %s113
      %p117 = scmp.eq.s32.totalorder %s14, 0
      %p118 = por %p116, %p117
      %p119 = scmp.ne.s32.totalorder %s111, %s113
      %p120 = scmp.eq.s32.totalorder %s19, 3
      %p121 = por %p119, %p120
      %p122 = scmp.ne.s32.totalorder %s113, %s114
      %p123 = scmp.eq.s32.totalorder %s19, 0
      %p124 = por %p122, %p123
      %p125 = scmp.ne.s32.totalorder %s113, %s114
      %p126 = scmp.eq.s32.totalorder %s20, 3
      %p127 = por %p125, %p126
      %p129 = scmp.ne.s32.totalorder %s114, %s128
      %p130 = scmp.eq.s32.totalorder %s20, 0
      %p131 = por %p129, %p130
      %s132 = ssub.s32 %s14, %s21
      %p133 = scmp.eq.s32.totalorder %s132, 0
      %s135 = sadd.s32 %s134, 1
      %s136 = scalar_select %p133, %s134, %s135
      %p139 = pneg %p133
      %p140 = scmp.eq.s32.totalorder %s14, 3
      %p141 = por %p139, %p140
      %p142 = scmp.ne.s32.totalorder %s134, %s137
      %p143 = scmp.eq.s32.totalorder %s14, 0
      %p144 = por %p142, %p143
      %p145 = scmp.ne.s32.totalorder %s134, %s137
      %p146 = scmp.eq.s32.totalorder %s19, 3
      %p147 = por %p145, %p146
      %p148 = scmp.ne.s32.totalorder %s137, %s138
      %p149 = scmp.eq.s32.totalorder %s19, 0
      %p150 = por %p148, %p149
      %p151 = scmp.ne.s32.totalorder %s137, %s138
      %p152 = scmp.eq.s32.totalorder %s20, 3
      %p153 = por %p151, %p152
      %p155 = scmp.ne.s32.totalorder %s138, %s154
      %p156 = scmp.eq.s32.totalorder %s20, 0
      %p157 = por %p155, %p156
      %p158 = scmp.le.s32.totalorder 1, %s14
      %p159 = scmp.lt.s32.totalorder %s14, 5
      %p160 = pnand %p158, %p159
      %p161 = pneg %p160
      // Predicated region
      $region9: #{tpu_custom_call.1} parent=5 // pred_check
        _
      $region10: #{tpu_custom_call.1} parent=5 // pred_check_branch
        %163 = sbr.rel (%p160) target = $region12
      $region11: #{tpu_custom_call.1} parent=5 // pred_region
        %s164 = ssub.s32 %s14, 1
        // Predicated region
        $region13: #{tpu_custom_call.1} parent=11 // pred_check
          %p165 = pneg %p61
        $region14: #{tpu_custom_call.1} parent=11 // pred_check_branch
          %167 = sbr.rel (%p165) target = $region16
        $region15: #{tpu_custom_call.1} parent=11 // pred_region
          _
        $region16: #{tpu_custom_call.1} parent=11 // pred_fallthru
          _
        // Predicated region
        $region17: #{tpu_custom_call.1} parent=11 // pred_check
          %p168 = pneg %p82
        $region18: #{tpu_custom_call.1} parent=11 // pred_check_branch
          %170 = sbr.rel (%p168) target = $region20
        $region19: #{tpu_custom_call.1} parent=11 // pred_region
          _
        $region20: #{tpu_custom_call.1} parent=11 // pred_fallthru
          _
        // Predicated region
        $region21: #{tpu_custom_call.1} parent=11 // pred_check
          %p171 = pneg %p103
        $region22: #{tpu_custom_call.1} parent=11 // pred_check_branch
          %173 = sbr.rel (%p171) target = $region24
        $region23: #{tpu_custom_call.1} parent=11 // pred_region
          _
        $region24: #{tpu_custom_call.1} parent=11 // pred_fallthru
          _
        // Predicated region
        $region25: #{tpu_custom_call.1} parent=11 // pred_check
          %p174 = pneg %p124
        $region26: #{tpu_custom_call.1} parent=11 // pred_check_branch
          %176 = sbr.rel (%p174) target = $region28
        $region27: #{tpu_custom_call.1} parent=11 // pred_region
          _
        $region28: #{tpu_custom_call.1} parent=11 // pred_fallthru
          _
      $region12: #{tpu_custom_call.1} parent=5 // pred_fallthru
        _
      %p177 = scmp.lt.s32.totalorder %s14, 4
      // Predicated region
      $region29: #{tpu_custom_call.1} parent=5 // pred_check
        %p178 = pneg %p177
      $region30: #{tpu_custom_call.1} parent=5 // pred_check_branch
        %180 = sbr.rel (%p178) target = $region32
      $region31: #{tpu_custom_call.1} parent=5 // pred_region
        // Predicated region
        $region33: #{tpu_custom_call.1} parent=31 // pred_check
          %p181 = pneg %p34
        $region34: #{tpu_custom_call.1} parent=31 // pred_check_branch
          %183 = sbr.rel (%p181) target = $region36
        $region35: #{tpu_custom_call.1} parent=31 // pred_region
          %s184 = smul.u32 16, %s14
          %p185 = scmp.lt.s32.totalorder %s184, 63
          %s186 = scalar_select %p185, %s184, 63
          %s187 = smul.addr %s186, 4
          %s188 = scalar_lea.vmem %s0, %s187
          %s189 = smul.u32 16, %s14
        $region36: #{tpu_custom_call.1} parent=31 // pred_fallthru
          _
      $region32: #{tpu_custom_call.1} parent=5 // pred_fallthru
        _
      %p190 = scmp.le.s32.totalorder 1, %s14
      %p191 = scmp.lt.s32.totalorder %s14, 5
      %p192 = pnand %p190, %p191
      %p193 = pneg %p192
      // Predicated region
      $region37: #{tpu_custom_call.1} parent=5 // pred_check
        _
      $region38: #{tpu_custom_call.1} parent=5 // pred_check_branch
        %195 = sbr.rel (%p192) target = $region40
      $region39: #{tpu_custom_call.1} parent=5 // pred_region
        %s196 = ssub.s32 %s14, 1
        %s197 = smul.u32 16, %s19
        %p198 = scmp.lt.s32.totalorder %s197, 63
        %s199 = scalar_select %p198, %s197, 63
        %s200 = smul.addr %s199, 4
        %s201 = scalar_lea.vmem %s0, %s200
        %p202 = pneg %p40
        %p203 = pneg %p37
        %p204 = pneg %p61
        %p205 = pneg %p58
        %p206 = pneg %p82
        %p207 = pneg %p79
        %p208 = pneg %p103
        %p209 = pneg %p100
        %p210 = pneg %p124
        %p211 = pneg %p121
        %p212 = pneg %p150
        %p213 = pneg %p147
        %s214 = sand.u32 %s137, 1
        %s215 = scalar_lea.sflag [#allocation3], %s214
        %s216 = sand.u32 %s137, 1
        %s217 = smul.addr %s216, 64
        %s218 = scalar_lea.vmem [#allocation2], %s217
        %s219 = smul.u32 16, %s19
        %p220 = scmp.lt.s32.totalorder %s219, 63
        %s221 = scalar_select %p220, %s219, 63
        %s222 = smul.addr %s221, 4
        %s223 = scalar_lea.vmem %s0, %s222
        %s224 = smul.u32 16, %s19
        %s225 = smul.u32 16, %s19
        %v227 = vld [vmem:[%s223] sm:$0xf]
        %v228 = vld [vmem:[%s223 + $0x4] sm:$0xf]
        %v229 = vld [vmem:[%s223 + $0x8] sm:$0xf]
        %v230 = vld [vmem:[%s223 + $0xc] sm:$0xf]
        %v231 = vld [vmem:[%s223 + $0x10] sm:$0xf]
        %v232 = vld [vmem:[%s223 + $0x14] sm:$0xf]
        %v233 = vld [vmem:[%s223 + $0x18] sm:$0xf]
        %v234 = vld [vmem:[%s223 + $0x1c] sm:$0xf]
        %v235 = vld [vmem:[%s223 + $0x20] sm:$0xf]
        %v236 = vld [vmem:[%s223 + $0x24] sm:$0xf]
        %v237 = vld [vmem:[%s223 + $0x28] sm:$0xf]
        %v238 = vld [vmem:[%s223 + $0x2c] sm:$0xf]
        %v239 = vld [vmem:[%s223 + $0x30] sm:$0xf]
        %v240 = vld [vmem:[%s223 + $0x34] sm:$0xf]
        %v241 = vld [vmem:[%s223 + $0x38] sm:$0xf]
        %v242 = vld [vmem:[%s223 + $0x3c] sm:$0xf]
        %v243 = vld [vmem:[%s1] sm:$0xff]
        %v244 = vld [vmem:[%s1 + $0x8] sm:$0xff]
        %v245 = vld [vmem:[%s1 + $0x10] sm:$0xff]
        %v246 = vld [vmem:[%s1 + $0x18] sm:$0xff]
        %v247 = vld [vmem:[%s1 + $0x20] sm:$0xff]
        %v248 = vld [vmem:[%s1 + $0x28] sm:$0xff]
        %v249 = vld [vmem:[%s1 + $0x30] sm:$0xff]
        %v250 = vld [vmem:[%s1 + $0x38] sm:$0xff]
        %v251 = vld [vmem:[%s1 + $0x40] sm:$0x33]
        %v252 = vld [vmem:[%s1 + $0x48] sm:$0x33]
        %v253 = vld [vmem:[%s2] sm:$0xf]
        %v255 = vlaneseq
        %v256 = vshrl.u32 %v255, 7
        %v257 = vsub.s32 0, %v256
        %v258 = vrot.slane %v253, %v257
        %v259 = vlaneseq
        %v260 = vshrl.u32 %v259, 7
        %v261 = vsub.s32 1, %v260
        %v262 = vrot.slane %v253, %v261
        %v263 = vlaneseq
        %v264 = vshrl.u32 %v263, 7
        %v265 = vsub.s32 2, %v264
        %v266 = vrot.slane %v253, %v265
        %v267 = vlaneseq
        %v268 = vshrl.u32 %v267, 7
        %v269 = vsub.s32 3, %v268
        %v270 = vrot.slane %v253, %v269
        %v291 = vunpack.c.l.b16 %v227
        %v292 = vunpack.c.l.b16 %v228
        %v293 = vunpack.c.l.b16 %v229
        %v294 = vunpack.c.l.b16 %v230
        %v295 = vunpack.c.l.b16 %v231
        %v296 = vunpack.c.l.b16 %v232
        %v297 = vunpack.c.l.b16 %v233
        %v298 = vunpack.c.l.b16 %v234
        %v299 = vunpack.c.l.b16 %v235
        %v300 = vunpack.c.l.b16 %v236
        %v301 = vunpack.c.l.b16 %v237
        %v302 = vunpack.c.l.b16 %v238
        %v303 = vunpack.c.l.b16 %v239
        %v304 = vunpack.c.l.b16 %v240
        %v305 = vunpack.c.l.b16 %v241
        %v306 = vunpack.c.l.b16 %v242
        %v307 = vpack.c.b16 %v292, %v291
        %v308 = vpack.c.b16 %v294, %v293
        %v309 = vpack.c.b16 %v296, %v295
        %v310 = vpack.c.b16 %v298, %v297
        %v311 = vpack.c.b16 %v300, %v299
        %v312 = vpack.c.b16 %v302, %v301
        %v313 = vpack.c.b16 %v304, %v303
        %v314 = vpack.c.b16 %v306, %v305
        %v325 = vunpack.c.l.b16 %v243
        %v326 = vunpack.c.h.b16 %v243
        %v327 = vunpack.c.l.b16 %v244
        %v328 = vunpack.c.h.b16 %v244
        %v329 = vunpack.c.l.b16 %v245
        %v330 = vunpack.c.h.b16 %v245
        %v331 = vunpack.c.l.b16 %v246
        %v332 = vunpack.c.h.b16 %v246
        %v333 = vunpack.c.l.b16 %v247
        %v334 = vunpack.c.h.b16 %v247
        %v335 = vunpack.c.l.b16 %v248
        %v336 = vunpack.c.h.b16 %v248
        %v337 = vunpack.c.l.b16 %v249
        %v338 = vunpack.c.h.b16 %v249
        %v339 = vunpack.c.l.b16 %v250
        %v340 = vunpack.c.h.b16 %v250
        %v341 = vunpack.c.l.b16 %v251
        %v342 = vunpack.c.h.b16 %v251
        %v343 = vunpack.c.l.b16 %v252
        %v344 = vunpack.c.h.b16 %v252
        %v345 = vpack.c.b16 %v329, %v325
        %v346 = vpack.c.b16 %v330, %v326
        %v347 = vpack.c.b16 %v331, %v327
        %v348 = vpack.c.b16 %v332, %v328
        %v349 = vpack.c.b16 %v337, %v333
        %v350 = vpack.c.b16 %v338, %v334
        %v351 = vpack.c.b16 %v339, %v335
        %v352 = vpack.c.b16 %v340, %v336
        %v353 = vpack.c.b16 %v341, %v341
        %v354 = vpack.c.b16 %v342, %v342
        %v355 = vpack.c.b16 %v343, %v343
        %v356 = vpack.c.b16 %v344, %v344
        %vm365 = vcmask 293888
        %v367 = vsel %vm365, %v307, 0
        %v370 = vsel %vm365, %v308, 0
        %v373 = vsel %vm365, %v309, 0
        %v376 = vsel %vm365, %v310, 0
        %v379 = vsel %vm365, %v311, 0
        %v382 = vsel %vm365, %v312, 0
        %v385 = vsel %vm365, %v313, 0
        %v388 = vsel %vm365, %v314, 0
        %vm390 = vcmask 1041408
        %v392 = vsel %vm390, %v353, 0
        %v395 = vsel %vm390, %v354, 0
        %v398 = vsel %vm390, %v355, 0
        %v401 = vsel %vm390, %v356, 0
        %403 = vmatprep.subr.bf16.mxu0 %v346
        %404 = vmatpush1.bf16.msra.mxu0 %v345
        %405 = vmatprep.subr.bf16.mxu0 %v350
        %406 = vmatpush1.bf16.msra.mxu0 %v349
        %407 = vmatprep.subr.bf16.mxu0 %v395
        %408 = vmatpush1.bf16.msra.mxu0 %v392
        %409 = vmatprep.subr.bf16.mxu0 0
        %410 = vmatpush1.bf16.msra.mxu0 0
        %411 = vmatprep.subr.bf16.mxu0 0
        %412 = vmatpush1.bf16.msra.mxu0 0
        %413 = vmatprep.subr.bf16.mxu0 0
        %414 = vmatpush1.bf16.msra.mxu0 0
        %415 = vmatprep.subr.bf16.mxu0 0
        %416 = vmatpush1.bf16.msra.mxu0 0
        %417 = vmatprep.subr.bf16.mxu0 0
        %418 = vmatpush1.bf16.msra.mxu0 0
        %419 = vmatprep.subr.bf16.mxu0 0
        %420 = vmatpush1.bf16.msra.mxu0 0
        %421 = vmatprep.subr.bf16.mxu0 0
        %422 = vmatpush1.bf16.msra.mxu0 0
        %423 = vmatprep.subr.bf16.mxu0 0
        %424 = vmatpush1.bf16.msra.mxu0 0
        %425 = vmatprep.subr.bf16.mxu0 0
        %426 = vmatpush1.bf16.msra.mxu0 0
        %427 = vmatprep.subr.bf16.mxu0 0
        %428 = vmatpush1.bf16.msra.mxu0 0
        %429 = vmatprep.subr.bf16.mxu0 0
        %430 = vmatpush1.bf16.msra.mxu0 0
        %431 = vmatprep.subr.bf16.mxu0 0
        %432 = vmatpush1.bf16.msra.mxu0 0
        %433 = vmatprep.subr.bf16.mxu0 0
        %434 = vmatpush1.bf16.msra.mxu0 0
        %435 = vmatprep.mubr.bf16.mxu0 0
        %436 = vmatmul.mubr.bf16.gmra.mrb[0].mxu0 %v367
        %v437 = vpop.f32.mrb[0].mxu0
        %v438 = vadd.f32 %v258, %v437
        %v439 = vpop.f32.mrb[0].mxu0
        %v440 = vadd.f32 %v262, %v439
        %v441 = vpop.f32.mrb[0].mxu0
        %v442 = vadd.f32 %v258, %v441
        %v443 = vpop.f32.mrb[0].mxu0
        %v444 = vadd.f32 %v262, %v443
        %445 = vmatprep.mubr.bf16.mxu0 0
        %446 = vmatmul.mubr.bf16.gmra.mrb[0].mxu0 %v370
        %v447 = vpop.f32.mrb[0].mxu0
        %v448 = vadd.f32 %v258, %v447
        %v449 = vpop.f32.mrb[0].mxu0
        %v450 = vadd.f32 %v262, %v449
        %v451 = vpop.f32.mrb[0].mxu0
        %v452 = vadd.f32 %v258, %v451
        %v453 = vpop.f32.mrb[0].mxu0
        %v454 = vadd.f32 %v262, %v453
        %455 = vmatprep.mubr.bf16.mxu0 0
        %456 = vmatmul.mubr.bf16.gmra.mrb[0].mxu0 %v373
        %v457 = vpop.f32.mrb[0].mxu0
        %v458 = vadd.f32 %v258, %v457
        %v459 = vpop.f32.mrb[0].mxu0
        %v460 = vadd.f32 %v262, %v459
        %v461 = vpop.f32.mrb[0].mxu0
        %v462 = vadd.f32 %v258, %v461
        %v463 = vpop.f32.mrb[0].mxu0
        %v464 = vadd.f32 %v262, %v463
        %465 = vmatprep.mubr.bf16.mxu0 0
        %466 = vmatmul.mubr.bf16.gmra.mrb[0].mxu0 %v376
        %v467 = vpop.f32.mrb[0].mxu0
        %v468 = vadd.f32 %v258, %v467
        %v469 = vpop.f32.mrb[0].mxu0
        %v470 = vadd.f32 %v262, %v469
        %v471 = vpop.f32.mrb[0].mxu0
        %v472 = vadd.f32 %v258, %v471
        %v473 = vpop.f32.mrb[0].mxu0
        %v474 = vadd.f32 %v262, %v473
        %475 = vmatprep.mubr.bf16.mxu0 0
        %476 = vmatmul.mubr.bf16.gmra.mrb[0].mxu0 %v379
        %v477 = vpop.f32.mrb[0].mxu0
        %v478 = vadd.f32 %v258, %v477
        %v479 = vpop.f32.mrb[0].mxu0
        %v480 = vadd.f32 %v262, %v479
        %v481 = vpop.f32.mrb[0].mxu0
        %v482 = vadd.f32 %v258, %v481
        %v483 = vpop.f32.mrb[0].mxu0
        %v484 = vadd.f32 %v262, %v483
        %485 = vmatprep.mubr.bf16.mxu0 0
        %486 = vmatmul.mubr.bf16.gmra.mrb[0].mxu0 %v382
        %v487 = vpop.f32.mrb[0].mxu0
        %v488 = vadd.f32 %v258, %v487
        %v489 = vpop.f32.mrb[0].mxu0
        %v490 = vadd.f32 %v262, %v489
        %v491 = vpop.f32.mrb[0].mxu0
        %v492 = vadd.f32 %v258, %v491
        %v493 = vpop.f32.mrb[0].mxu0
        %v494 = vadd.f32 %v262, %v493
        %495 = vmatprep.mubr.bf16.mxu0 0
        %496 = vmatmul.mubr.bf16.gmra.mrb[0].mxu0 %v385
        %v497 = vpop.f32.mrb[0].mxu0
        %v498 = vadd.f32 %v258, %v497
        %v499 = vpop.f32.mrb[0].mxu0
        %v500 = vadd.f32 %v262, %v499
        %v501 = vpop.f32.mrb[0].mxu0
        %v502 = vadd.f32 %v258, %v501
        %v503 = vpop.f32.mrb[0].mxu0
        %v504 = vadd.f32 %v262, %v503
        %505 = vmatprep.mubr.bf16.mxu0 0
        %506 = vmatmul.mubr.bf16.gmra.mrb[0].mxu0 %v388
        %v507 = vpop.f32.mrb[0].mxu0
        %v508 = vadd.f32 %v258, %v507
        %v509 = vpop.f32.mrb[0].mxu0
        %v510 = vadd.f32 %v262, %v509
        %v511 = vpop.f32.mrb[0].mxu0
        %v512 = vadd.f32 %v258, %v511
        %v513 = vpop.f32.mrb[0].mxu0
        %v514 = vadd.f32 %v262, %v513
        %515 = vdwg.mxu0
        %516 = vmatprep.subr.bf16.mxu0 %v348
        %517 = vmatpush1.bf16.msra.mxu0 %v347
        %518 = vmatprep.subr.bf16.mxu0 %v352
        %519 = vmatpush1.bf16.msra.mxu0 %v351
        %520 = vmatprep.subr.bf16.mxu0 %v401
        %521 = vmatpush1.bf16.msra.mxu0 %v398
        %522 = vmatprep.subr.bf16.mxu0 0
        %523 = vmatpush1.bf16.msra.mxu0 0
        %524 = vmatprep.subr.bf16.mxu0 0
        %525 = vmatpush1.bf16.msra.mxu0 0
        %526 = vmatprep.subr.bf16.mxu0 0
        %527 = vmatpush1.bf16.msra.mxu0 0
        %528 = vmatprep.subr.bf16.mxu0 0
        %529 = vmatpush1.bf16.msra.mxu0 0
        %530 = vmatprep.subr.bf16.mxu0 0
        %531 = vmatpush1.bf16.msra.mxu0 0
        %532 = vmatprep.subr.bf16.mxu0 0
        %533 = vmatpush1.bf16.msra.mxu0 0
        %534 = vmatprep.subr.bf16.mxu0 0
        %535 = vmatpush1.bf16.msra.mxu0 0
        %536 = vmatprep.subr.bf16.mxu0 0
        %537 = vmatpush1.bf16.msra.mxu0 0
        %538 = vmatprep.subr.bf16.mxu0 0
        %539 = vmatpush1.bf16.msra.mxu0 0
        %540 = vmatprep.subr.bf16.mxu0 0
        %541 = vmatpush1.bf16.msra.mxu0 0
        %542 = vmatprep.subr.bf16.mxu0 0
        %543 = vmatpush1.bf16.msra.mxu0 0
        %544 = vmatprep.subr.bf16.mxu0 0
        %545 = vmatpush1.bf16.msra.mxu0 0
        %546 = vmatprep.subr.bf16.mxu0 0
        %547 = vmatpush1.bf16.msra.mxu0 0
        %548 = vmatprep.mubr.bf16.mxu0 0
        %549 = vmatmul.mubr.bf16.gmra.mrb[0].mxu0 %v367
        %v550 = vpop.f32.mrb[0].mxu0
        %v551 = vadd.f32 %v266, %v550
        %v552 = vpop.f32.mrb[0].mxu0
        %v553 = vadd.f32 %v270, %v552
        %v554 = vpop.f32.mrb[0].mxu0
        %v555 = vadd.f32 %v266, %v554
        %v556 = vpop.f32.mrb[0].mxu0
        %v557 = vadd.f32 %v270, %v556
        %558 = vmatprep.mubr.bf16.mxu0 0
        %559 = vmatmul.mubr.bf16.gmra.mrb[0].mxu0 %v370
        %v560 = vpop.f32.mrb[0].mxu0
        %v561 = vadd.f32 %v266, %v560
        %v562 = vpop.f32.mrb[0].mxu0
        %v563 = vadd.f32 %v270, %v562
        %v564 = vpop.f32.mrb[0].mxu0
        %v565 = vadd.f32 %v266, %v564
        %v566 = vpop.f32.mrb[0].mxu0
        %v567 = vadd.f32 %v270, %v566
        %568 = vmatprep.mubr.bf16.mxu0 0
        %569 = vmatmul.mubr.bf16.gmra.mrb[0].mxu0 %v373
        %v570 = vpop.f32.mrb[0].mxu0
        %v571 = vadd.f32 %v266, %v570
        %v572 = vpop.f32.mrb[0].mxu0
        %v573 = vadd.f32 %v270, %v572
        %v574 = vpop.f32.mrb[0].mxu0
        %v575 = vadd.f32 %v266, %v574
        %v576 = vpop.f32.mrb[0].mxu0
        %v577 = vadd.f32 %v270, %v576
        %578 = vmatprep.mubr.bf16.mxu0 0
        %579 = vmatmul.mubr.bf16.gmra.mrb[0].mxu0 %v376
        %v580 = vpop.f32.mrb[0].mxu0
        %v581 = vadd.f32 %v266, %v580
        %v582 = vpop.f32.mrb[0].mxu0
        %v583 = vadd.f32 %v270, %v582
        %v584 = vpop.f32.mrb[0].mxu0
        %v585 = vadd.f32 %v266, %v584
        %v586 = vpop.f32.mrb[0].mxu0
        %v587 = vadd.f32 %v270, %v586
        %588 = vmatprep.mubr.bf16.mxu0 0
        %589 = vmatmul.mubr.bf16.gmra.mrb[0].mxu0 %v379
        %v590 = vpop.f32.mrb[0].mxu0
        %v591 = vadd.f32 %v266, %v590
        %v592 = vpop.f32.mrb[0].mxu0
        %v593 = vadd.f32 %v270, %v592
        %v594 = vpop.f32.mrb[0].mxu0
        %v595 = vadd.f32 %v266, %v594
        %v596 = vpop.f32.mrb[0].mxu0
        %v597 = vadd.f32 %v270, %v596
        %598 = vmatprep.mubr.bf16.mxu0 0
        %599 = vmatmul.mubr.bf16.gmra.mrb[0].mxu0 %v382
        %v600 = vpop.f32.mrb[0].mxu0
        %v601 = vadd.f32 %v266, %v600
        %v602 = vpop.f32.mrb[0].mxu0
        %v603 = vadd.f32 %v270, %v602
        %v604 = vpop.f32.mrb[0].mxu0
        %v605 = vadd.f32 %v266, %v604
        %v606 = vpop.f32.mrb[0].mxu0
        %v607 = vadd.f32 %v270, %v606
        %608 = vmatprep.mubr.bf16.mxu0 0
        %609 = vmatmul.mubr.bf16.gmra.mrb[0].mxu0 %v385
        %v610 = vpop.f32.mrb[0].mxu0
        %v611 = vadd.f32 %v266, %v610
        %v612 = vpop.f32.mrb[0].mxu0
        %v613 = vadd.f32 %v270, %v612
        %v614 = vpop.f32.mrb[0].mxu0
        %v615 = vadd.f32 %v266, %v614
        %v616 = vpop.f32.mrb[0].mxu0
        %v617 = vadd.f32 %v270, %v616
        %618 = vmatprep.mubr.bf16.mxu0 0
        %619 = vmatmul.mubr.bf16.gmra.mrb[0].mxu0 %v388
        %v620 = vpop.f32.mrb[0].mxu0
        %v621 = vadd.f32 %v266, %v620
        %v622 = vpop.f32.mrb[0].mxu0
        %v623 = vadd.f32 %v270, %v622
        %v624 = vpop.f32.mrb[0].mxu0
        %v625 = vadd.f32 %v266, %v624
        %v626 = vpop.f32.mrb[0].mxu0
        %v627 = vadd.f32 %v270, %v626
        %628 = vdwg.mxu0
        %v629 = vmax.f32 %v438, 0.0
        %v630 = vmax.f32 %v440, 0.0
        %v631 = vmax.f32 %v551, 0.0
        %v632 = vmax.f32 %v553, 0.0
        %v633 = vmax.f32 %v442, 0.0
        %v634 = vmax.f32 %v444, 0.0
        %v635 = vmax.f32 %v555, 0.0
        %v636 = vmax.f32 %v557, 0.0
        %v637 = vmax.f32 %v448, 0.0
        %v638 = vmax.f32 %v450, 0.0
        %v639 = vmax.f32 %v561, 0.0
        %v640 = vmax.f32 %v563, 0.0
        %v641 = vmax.f32 %v452, 0.0
        %v642 = vmax.f32 %v454, 0.0
        %v643 = vmax.f32 %v565, 0.0
        %v644 = vmax.f32 %v567, 0.0
        %v645 = vmax.f32 %v458, 0.0
        %v646 = vmax.f32 %v460, 0.0
        %v647 = vmax.f32 %v571, 0.0
        %v648 = vmax.f32 %v573, 0.0
        %v649 = vmax.f32 %v462, 0.0
        %v650 = vmax.f32 %v464, 0.0
        %v651 = vmax.f32 %v575, 0.0
        %v652 = vmax.f32 %v577, 0.0
        %v653 = vmax.f32 %v468, 0.0
        %v654 = vmax.f32 %v470, 0.0
        %v655 = vmax.f32 %v581, 0.0
        %v656 = vmax.f32 %v583, 0.0
        %v657 = vmax.f32 %v472, 0.0
        %v658 = vmax.f32 %v474, 0.0
        %v659 = vmax.f32 %v585, 0.0
        %v660 = vmax.f32 %v587, 0.0
        %v661 = vmax.f32 %v478, 0.0
        %v662 = vmax.f32 %v480, 0.0
        %v663 = vmax.f32 %v591, 0.0
        %v664 = vmax.f32 %v593, 0.0
        %v665 = vmax.f32 %v482, 0.0
        %v666 = vmax.f32 %v484, 0.0
        %v667 = vmax.f32 %v595, 0.0
        %v668 = vmax.f32 %v597, 0.0
        %v669 = vmax.f32 %v488, 0.0
        %v670 = vmax.f32 %v490, 0.0
        %v671 = vmax.f32 %v601, 0.0
        %v672 = vmax.f32 %v603, 0.0
        %v673 = vmax.f32 %v492, 0.0
        %v674 = vmax.f32 %v494, 0.0
        %v675 = vmax.f32 %v605, 0.0
        %v676 = vmax.f32 %v607, 0.0
        %v677 = vmax.f32 %v498, 0.0
        %v678 = vmax.f32 %v500, 0.0
        %v679 = vmax.f32 %v611, 0.0
        %v680 = vmax.f32 %v613, 0.0
        %v681 = vmax.f32 %v502, 0.0
        %v682 = vmax.f32 %v504, 0.0
        %v683 = vmax.f32 %v615, 0.0
        %v684 = vmax.f32 %v617, 0.0
        %v685 = vmax.f32 %v508, 0.0
        %v686 = vmax.f32 %v510, 0.0
        %v687 = vmax.f32 %v621, 0.0
        %v688 = vmax.f32 %v623, 0.0
        %v689 = vmax.f32 %v512, 0.0
        %v690 = vmax.f32 %v514, 0.0
        %v691 = vmax.f32 %v625, 0.0
        %v692 = vmax.f32 %v627, 0.0
        %v693 = vpack.c.bf16 %v633, %v629
        %v694 = vpack.c.bf16 %v634, %v630
        %v695 = vpack.c.bf16 %v635, %v631
        %v696 = vpack.c.bf16 %v636, %v632
        %v697 = vpack.c.bf16 %v641, %v637
        %v698 = vpack.c.bf16 %v642, %v638
        %v699 = vpack.c.bf16 %v643, %v639
        %v700 = vpack.c.bf16 %v644, %v640
        %v701 = vpack.c.bf16 %v649, %v645
        %v702 = vpack.c.bf16 %v650, %v646
        %v703 = vpack.c.bf16 %v651, %v647
        %v704 = vpack.c.bf16 %v652, %v648
        %v705 = vpack.c.bf16 %v657, %v653
        %v706 = vpack.c.bf16 %v658, %v654
        %v707 = vpack.c.bf16 %v659, %v655
        %v708 = vpack.c.bf16 %v660, %v656
        %v709 = vpack.c.bf16 %v665, %v661
        %v710 = vpack.c.bf16 %v666, %v662
        %v711 = vpack.c.bf16 %v667, %v663
        %v712 = vpack.c.bf16 %v668, %v664
        %v713 = vpack.c.bf16 %v673, %v669
        %v714 = vpack.c.bf16 %v674, %v670
        %v715 = vpack.c.bf16 %v675, %v671
        %v716 = vpack.c.bf16 %v676, %v672
        %v717 = vpack.c.bf16 %v681, %v677
        %v718 = vpack.c.bf16 %v682, %v678
        %v719 = vpack.c.bf16 %v683, %v679
        %v720 = vpack.c.bf16 %v684, %v680
        %v721 = vpack.c.bf16 %v689, %v685
        %v722 = vpack.c.bf16 %v690, %v686
        %v723 = vpack.c.bf16 %v691, %v687
        %v724 = vpack.c.bf16 %v692, %v688
        %v725 = vld [vmem:[%s3] sm:$0xf]
        %v726 = vld [vmem:[%s3 + $0x4] sm:$0xf]
        %v727 = vld [vmem:[%s3 + $0x8] sm:$0xf]
        %v728 = vld [vmem:[%s3 + $0xc] sm:$0xf]
        %v729 = vld [vmem:[%s3 + $0x10] sm:$0xf]
        %v730 = vld [vmem:[%s3 + $0x14] sm:$0xf]
        %v731 = vld [vmem:[%s3 + $0x18] sm:$0xf]
        %v732 = vld [vmem:[%s3 + $0x1c] sm:$0xf]
        %v733 = vld [vmem:[%s3 + $0x20] sm:$0xf]
        %v734 = vld [vmem:[%s3 + $0x24] sm:$0xf]
        %v735 = vld [vmem:[%s3 + $0x28] sm:$0xf]
        %v736 = vld [vmem:[%s3 + $0x2c] sm:$0xf]
        %v737 = vld [vmem:[%s3 + $0x30] sm:$0xf]
        %v738 = vld [vmem:[%s3 + $0x34] sm:$0xf]
        %v739 = vld [vmem:[%s3 + $0x38] sm:$0xf]
        %v740 = vld [vmem:[%s3 + $0x3c] sm:$0xf]
        %v741 = vld [vmem:[%s3 + $0x40] sm:$0xf]
        %v742 = vld [vmem:[%s3 + $0x44] sm:$0xf]
        %v743 = vld [vmem:[%s3 + $0x48] sm:$0xf]
        %v744 = vld [vmem:[%s3 + $0x4c] sm:$0xf]
        %v745 = vld [vmem:[%s3 + $0x50] sm:$0xf]
        %v746 = vld [vmem:[%s3 + $0x54] sm:$0xf]
        %v747 = vld [vmem:[%s3 + $0x58] sm:$0xf]
        %v748 = vld [vmem:[%s3 + $0x5c] sm:$0xf]
        %v749 = vld [vmem:[%s3 + $0x60] sm:$0xf]
        %v750 = vld [vmem:[%s3 + $0x64] sm:$0xf]
        %v751 = vld [vmem:[%s3 + $0x68] sm:$0xf]
        %v752 = vld [vmem:[%s3 + $0x6c] sm:$0xf]
        %v753 = vld [vmem:[%s3 + $0x70] sm:$0xf]
        %v754 = vld [vmem:[%s3 + $0x74] sm:$0xf]
        %v755 = vld [vmem:[%s3 + $0x78] sm:$0xf]
        %v756 = vld [vmem:[%s3 + $0x7c] sm:$0xf]
        %v757 = vld [vmem:[%s3 + $0x80] sm:$0xf]
        %v758 = vld [vmem:[%s3 + $0x84] sm:$0xf]
        %v759 = vld [vmem:[%s3 + $0x88] sm:$0xf]
        %v760 = vld [vmem:[%s3 + $0x8c] sm:$0xf]
        %v761 = vld [vmem:[%s3 + $0x90] sm:$0xf]
        %v762 = vld [vmem:[%s3 + $0x94] sm:$0xf]
        %v763 = vld [vmem:[%s3 + $0x98] sm:$0xf]
        %v764 = vld [vmem:[%s3 + $0x9c] sm:$0xf]
        %v765 = vld [vmem:[%s3 + $0xa0] sm:$0xf]
        %v766 = vld [vmem:[%s3 + $0xa4] sm:$0xf]
        %v767 = vld [vmem:[%s3 + $0xa8] sm:$0xf]
        %v768 = vld [vmem:[%s3 + $0xac] sm:$0xf]
        %v769 = vld [vmem:[%s3 + $0xb0] sm:$0xf]
        %v770 = vld [vmem:[%s3 + $0xb4] sm:$0xf]
        %v771 = vld [vmem:[%s3 + $0xb8] sm:$0xf]
        %v772 = vld [vmem:[%s3 + $0xbc] sm:$0xf]
        %v773 = vld [vmem:[%s3 + $0xc0] sm:$0xf]
        %v774 = vld [vmem:[%s3 + $0xc4] sm:$0xf]
        %v775 = vld [vmem:[%s3 + $0xc8] sm:$0xf]
        %v776 = vld [vmem:[%s3 + $0xcc] sm:$0xf]
        %v777 = vld [vmem:[%s3 + $0xd0] sm:$0xf]
        %v778 = vld [vmem:[%s3 + $0xd4] sm:$0xf]
        %v779 = vld [vmem:[%s3 + $0xd8] sm:$0xf]
        %v780 = vld [vmem:[%s3 + $0xdc] sm:$0xf]
        %v781 = vld [vmem:[%s3 + $0xe0] sm:$0xf]
        %v782 = vld [vmem:[%s3 + $0xe4] sm:$0xf]
        %v783 = vld [vmem:[%s3 + $0xe8] sm:$0xf]
        %v784 = vld [vmem:[%s3 + $0xec] sm:$0xf]
        %v785 = vld [vmem:[%s3 + $0xf0] sm:$0xf]
        %v786 = vld [vmem:[%s3 + $0xf4] sm:$0xf]
        %v787 = vld [vmem:[%s3 + $0xf8] sm:$0xf]
        %v788 = vld [vmem:[%s3 + $0xfc] sm:$0xf]
        %v789 = vld [vmem:[%s4] sm:$0x1]
        %v791 = vlaneseq
        %v792 = vshrl.u32 %v791, 7
        %v793 = vsub.s32 0, %v792
        %v794 = vrot.slane %v789, %v793
        %v860 = vunpack.c.l.b16 %v725
        %v861 = vunpack.c.l.b16 %v726
        %v862 = vunpack.c.l.b16 %v727
        %v863 = vunpack.c.l.b16 %v728
        %v864 = vunpack.c.l.b16 %v729
        %v865 = vunpack.c.l.b16 %v730
        %v866 = vunpack.c.l.b16 %v731
        %v867 = vunpack.c.l.b16 %v732
        %v868 = vunpack.c.l.b16 %v733
        %v869 = vunpack.c.l.b16 %v734
        %v870 = vunpack.c.l.b16 %v735
        %v871 = vunpack.c.l.b16 %v736
        %v872 = vunpack.c.l.b16 %v737
        %v873 = vunpack.c.l.b16 %v738
        %v874 = vunpack.c.l.b16 %v739
        %v875 = vunpack.c.l.b16 %v740
        %v876 = vunpack.c.l.b16 %v741
        %v877 = vunpack.c.l.b16 %v742
        %v878 = vunpack.c.l.b16 %v743
        %v879 = vunpack.c.l.b16 %v744
        %v880 = vunpack.c.l.b16 %v745
        %v881 = vunpack.c.l.b16 %v746
        %v882 = vunpack.c.l.b16 %v747
        %v883 = vunpack.c.l.b16 %v748
        %v884 = vunpack.c.l.b16 %v749
        %v885 = vunpack.c.l.b16 %v750
        %v886 = vunpack.c.l.b16 %v751
        %v887 = vunpack.c.l.b16 %v752
        %v888 = vunpack.c.l.b16 %v753
        %v889 = vunpack.c.l.b16 %v754
        %v890 = vunpack.c.l.b16 %v755
        %v891 = vunpack.c.l.b16 %v756
        %v892 = vunpack.c.l.b16 %v757
        %v893 = vunpack.c.l.b16 %v758
        %v894 = vunpack.c.l.b16 %v759
        %v895 = vunpack.c.l.b16 %v760
        %v896 = vunpack.c.l.b16 %v761
        %v897 = vunpack.c.l.b16 %v762
        %v898 = vunpack.c.l.b16 %v763
        %v899 = vunpack.c.l.b16 %v764
        %v900 = vunpack.c.l.b16 %v765
        %v901 = vunpack.c.l.b16 %v766
        %v902 = vunpack.c.l.b16 %v767
        %v903 = vunpack.c.l.b16 %v768
        %v904 = vunpack.c.l.b16 %v769
        %v905 = vunpack.c.l.b16 %v770
        %v906 = vunpack.c.l.b16 %v771
        %v907 = vunpack.c.l.b16 %v772
        %v908 = vunpack.c.l.b16 %v773
        %v909 = vunpack.c.l.b16 %v774
        %v910 = vunpack.c.l.b16 %v775
        %v911 = vunpack.c.l.b16 %v776
        %v912 = vunpack.c.l.b16 %v777
        %v913 = vunpack.c.l.b16 %v778
        %v914 = vunpack.c.l.b16 %v779
        %v915 = vunpack.c.l.b16 %v780
        %v916 = vunpack.c.l.b16 %v781
        %v917 = vunpack.c.l.b16 %v782
        %v918 = vunpack.c.l.b16 %v783
        %v919 = vunpack.c.l.b16 %v784
        %v920 = vunpack.c.l.b16 %v785
        %v921 = vunpack.c.l.b16 %v786
        %v922 = vunpack.c.l.b16 %v787
        %v923 = vunpack.c.l.b16 %v788
        %v924 = vpack.c.b16 %v861, %v860
        %v925 = vpack.c.b16 %v863, %v862
        %v926 = vpack.c.b16 %v865, %v864
        %v927 = vpack.c.b16 %v867, %v866
        %v928 = vpack.c.b16 %v869, %v868
        %v929 = vpack.c.b16 %v871, %v870
        %v930 = vpack.c.b16 %v873, %v872
        %v931 = vpack.c.b16 %v875, %v874
        %v932 = vpack.c.b16 %v877, %v876
        %v933 = vpack.c.b16 %v879, %v878
        %v934 = vpack.c.b16 %v881, %v880
        %v935 = vpack.c.b16 %v883, %v882
        %v936 = vpack.c.b16 %v885, %v884
        %v937 = vpack.c.b16 %v887, %v886
        %v938 = vpack.c.b16 %v889, %v888
        %v939 = vpack.c.b16 %v891, %v890
        %v940 = vpack.c.b16 %v893, %v892
        %v941 = vpack.c.b16 %v895, %v894
        %v942 = vpack.c.b16 %v897, %v896
        %v943 = vpack.c.b16 %v899, %v898
        %v944 = vpack.c.b16 %v901, %v900
        %v945 = vpack.c.b16 %v903, %v902
        %v946 = vpack.c.b16 %v905, %v904
        %v947 = vpack.c.b16 %v907, %v906
        %v948 = vpack.c.b16 %v909, %v908
        %v949 = vpack.c.b16 %v911, %v910
        %v950 = vpack.c.b16 %v913, %v912
        %v951 = vpack.c.b16 %v915, %v914
        %v952 = vpack.c.b16 %v917, %v916
        %v953 = vpack.c.b16 %v919, %v918
        %v954 = vpack.c.b16 %v921, %v920
        %v955 = vpack.c.b16 %v923, %v922
        %988 = vmatprep.subr.bf16.mxu0 0
        %989 = vmatpush1.bf16.msra.mxu0 %v924
        %990 = vmatprep.subr.bf16.mxu0 0
        %991 = vmatpush1.bf16.msra.mxu0 %v925
        %992 = vmatprep.subr.bf16.mxu0 0
        %993 = vmatpush1.bf16.msra.mxu0 %v926
        %994 = vmatprep.subr.bf16.mxu0 0
        %995 = vmatpush1.bf16.msra.mxu0 %v927
        %996 = vmatprep.subr.bf16.mxu0 0
        %997 = vmatpush1.bf16.msra.mxu0 %v928
        %998 = vmatprep.subr.bf16.mxu0 0
        %999 = vmatpush1.bf16.msra.mxu0 %v929
        %1000 = vmatprep.subr.bf16.mxu0 0
        %1001 = vmatpush1.bf16.msra.mxu0 %v930
        %1002 = vmatprep.subr.bf16.mxu0 0
        %1003 = vmatpush1.bf16.msra.mxu0 %v931
        %1004 = vmatprep.subr.bf16.mxu0 0
        %1005 = vmatpush1.bf16.msra.mxu0 %v932
        %1006 = vmatprep.subr.bf16.mxu0 0
        %1007 = vmatpush1.bf16.msra.mxu0 %v933
        %1008 = vmatprep.subr.bf16.mxu0 0
        %1009 = vmatpush1.bf16.msra.mxu0 %v934
        %1010 = vmatprep.subr.bf16.mxu0 0
        %1011 = vmatpush1.bf16.msra.mxu0 %v935
        %1012 = vmatprep.subr.bf16.mxu0 0
        %1013 = vmatpush1.bf16.msra.mxu0 %v936
        %1014 = vmatprep.subr.bf16.mxu0 0
        %1015 = vmatpush1.bf16.msra.mxu0 %v937
        %1016 = vmatprep.subr.bf16.mxu0 0
        %1017 = vmatpush1.bf16.msra.mxu0 %v938
        %1018 = vmatprep.subr.bf16.mxu0 0
        %1019 = vmatpush1.bf16.msra.mxu0 %v939
        %1020 = vmatprep.mubr.bf16.mxu0 %v694
        %1021 = vmatmul.mubr.bf16.gmra.mrb[0].mxu0 %v693
        %v1022 = vpop.f32.mrb[0].mxu0
        %v1023 = vadd.f32 %v794, %v1022
        %v1024 = vpop.f32.mrb[0].mxu0
        %v1025 = vpop.f32.mrb[0].mxu0
        %v1026 = vadd.f32 %v794, %v1025
        %v1027 = vpop.f32.mrb[0].mxu0
        %1028 = vmatprep.mubr.bf16.mxu0 %v698
        %1029 = vmatmul.mubr.bf16.gmra.mrb[0].mxu0 %v697
        %v1030 = vpop.f32.mrb[0].mxu0
        %v1031 = vadd.f32 %v794, %v1030
        %v1032 = vpop.f32.mrb[0].mxu0
        %v1033 = vpop.f32.mrb[0].mxu0
        %v1034 = vadd.f32 %v794, %v1033
        %v1035 = vpop.f32.mrb[0].mxu0
        %1036 = vmatprep.mubr.bf16.mxu0 %v702
        %1037 = vmatmul.mubr.bf16.gmra.mrb[0].mxu0 %v701
        %v1038 = vpop.f32.mrb[0].mxu0
        %v1039 = vadd.f32 %v794, %v1038
        %v1040 = vpop.f32.mrb[0].mxu0
        %v1041 = vpop.f32.mrb[0].mxu0
        %v1042 = vadd.f32 %v794, %v1041
        %v1043 = vpop.f32.mrb[0].mxu0
        %1044 = vmatprep.mubr.bf16.mxu0 %v706
        %1045 = vmatmul.mubr.bf16.gmra.mrb[0].mxu0 %v705
        %v1046 = vpop.f32.mrb[0].mxu0
        %v1047 = vadd.f32 %v794, %v1046
        %v1048 = vpop.f32.mrb[0].mxu0
        %v1049 = vpop.f32.mrb[0].mxu0
        %v1050 = vadd.f32 %v794, %v1049
        %v1051 = vpop.f32.mrb[0].mxu0
        %1052 = vmatprep.mubr.bf16.mxu0 %v710
        %1053 = vmatmul.mubr.bf16.gmra.mrb[0].mxu0 %v709
        %v1054 = vpop.f32.mrb[0].mxu0
        %v1055 = vadd.f32 %v794, %v1054
        %v1056 = vpop.f32.mrb[0].mxu0
        %v1057 = vpop.f32.mrb[0].mxu0
        %v1058 = vadd.f32 %v794, %v1057
        %v1059 = vpop.f32.mrb[0].mxu0
        %1060 = vmatprep.mubr.bf16.mxu0 %v714
        %1061 = vmatmul.mubr.bf16.gmra.mrb[0].mxu0 %v713
        %v1062 = vpop.f32.mrb[0].mxu0
        %v1063 = vadd.f32 %v794, %v1062
        %v1064 = vpop.f32.mrb[0].mxu0
        %v1065 = vpop.f32.mrb[0].mxu0
        %v1066 = vadd.f32 %v794, %v1065
        %v1067 = vpop.f32.mrb[0].mxu0
        %1068 = vmatprep.mubr.bf16.mxu0 %v718
        %1069 = vmatmul.mubr.bf16.gmra.mrb[0].mxu0 %v717
        %v1070 = vpop.f32.mrb[0].mxu0
        %v1071 = vadd.f32 %v794, %v1070
        %v1072 = vpop.f32.mrb[0].mxu0
        %v1073 = vpop.f32.mrb[0].mxu0
        %v1074 = vadd.f32 %v794, %v1073
        %v1075 = vpop.f32.mrb[0].mxu0
        %1076 = vmatprep.mubr.bf16.mxu0 %v722
        %1077 = vmatmul.mubr.bf16.gmra.mrb[0].mxu0 %v721
        %v1078 = vpop.f32.mrb[0].mxu0
        %v1079 = vadd.f32 %v794, %v1078
        %v1080 = vpop.f32.mrb[0].mxu0
        %v1081 = vpop.f32.mrb[0].mxu0
        %v1082 = vadd.f32 %v794, %v1081
        %v1083 = vpop.f32.mrb[0].mxu0
        %1084 = vdwg.mxu0
        %1085 = vmatprep.subr.bf16.mxu0 0
        %1086 = vmatpush1.bf16.msra.mxu0 %v940
        %1087 = vmatprep.subr.bf16.mxu0 0
        %1088 = vmatpush1.bf16.msra.mxu0 %v941
        %1089 = vmatprep.subr.bf16.mxu0 0
        %1090 = vmatpush1.bf16.msra.mxu0 %v942
        %1091 = vmatprep.subr.bf16.mxu0 0
        %1092 = vmatpush1.bf16.msra.mxu0 %v943
        %1093 = vmatprep.subr.bf16.mxu0 0
        %1094 = vmatpush1.bf16.msra.mxu0 %v944
        %1095 = vmatprep.subr.bf16.mxu0 0
        %1096 = vmatpush1.bf16.msra.mxu0 %v945
        %1097 = vmatprep.subr.bf16.mxu0 0
        %1098 = vmatpush1.bf16.msra.mxu0 %v946
        %1099 = vmatprep.subr.bf16.mxu0 0
        %1100 = vmatpush1.bf16.msra.mxu0 %v947
        %1101 = vmatprep.subr.bf16.mxu0 0
        %1102 = vmatpush1.bf16.msra.mxu0 %v948
        %1103 = vmatprep.subr.bf16.mxu0 0
        %1104 = vmatpush1.bf16.msra.mxu0 %v949
        %1105 = vmatprep.subr.bf16.mxu0 0
        %1106 = vmatpush1.bf16.msra.mxu0 %v950
        %1107 = vmatprep.subr.bf16.mxu0 0
        %1108 = vmatpush1.bf16.msra.mxu0 %v951
        %1109 = vmatprep.subr.bf16.mxu0 0
        %1110 = vmatpush1.bf16.msra.mxu0 %v952
        %1111 = vmatprep.subr.bf16.mxu0 0
        %1112 = vmatpush1.bf16.msra.mxu0 %v953
        %1113 = vmatprep.subr.bf16.mxu0 0
        %1114 = vmatpush1.bf16.msra.mxu0 %v954
        %1115 = vmatprep.subr.bf16.mxu0 0
        %1116 = vmatpush1.bf16.msra.mxu0 %v955
        %1117 = vmatprep.mubr.bf16.mxu0 %v696
        %1118 = vmatmul.mubr.bf16.gmra.mrb[0].mxu0 %v695
        %v1119 = vpop.f32.mrb[0].mxu0
        %v1120 = vadd.f32 %v1023, %v1119
        %v1121 = vpop.f32.mrb[0].mxu0
        %v1122 = vpop.f32.mrb[0].mxu0
        %v1123 = vadd.f32 %v1026, %v1122
        %v1124 = vpop.f32.mrb[0].mxu0
        %1125 = vmatprep.mubr.bf16.mxu0 %v700
        %1126 = vmatmul.mubr.bf16.gmra.mrb[0].mxu0 %v699
        %v1127 = vpop.f32.mrb[0].mxu0
        %v1128 = vadd.f32 %v1031, %v1127
        %v1129 = vpop.f32.mrb[0].mxu0
        %v1130 = vpop.f32.mrb[0].mxu0
        %v1131 = vadd.f32 %v1034, %v1130
        %v1132 = vpop.f32.mrb[0].mxu0
        %1133 = vmatprep.mubr.bf16.mxu0 %v704
        %1134 = vmatmul.mubr.bf16.gmra.mrb[0].mxu0 %v703
        %v1135 = vpop.f32.mrb[0].mxu0
        %v1136 = vadd.f32 %v1039, %v1135
        %v1137 = vpop.f32.mrb[0].mxu0
        %v1138 = vpop.f32.mrb[0].mxu0
        %v1139 = vadd.f32 %v1042, %v1138
        %v1140 = vpop.f32.mrb[0].mxu0
        %1141 = vmatprep.mubr.bf16.mxu0 %v708
        %1142 = vmatmul.mubr.bf16.gmra.mrb[0].mxu0 %v707
        %v1143 = vpop.f32.mrb[0].mxu0
        %v1144 = vadd.f32 %v1047, %v1143
        %v1145 = vpop.f32.mrb[0].mxu0
        %v1146 = vpop.f32.mrb[0].mxu0
        %v1147 = vadd.f32 %v1050, %v1146
        %v1148 = vpop.f32.mrb[0].mxu0
        %1149 = vmatprep.mubr.bf16.mxu0 %v712
        %1150 = vmatmul.mubr.bf16.gmra.mrb[0].mxu0 %v711
        %v1151 = vpop.f32.mrb[0].mxu0
        %v1152 = vadd.f32 %v1055, %v1151
        %v1153 = vpop.f32.mrb[0].mxu0
        %v1154 = vpop.f32.mrb[0].mxu0
        %v1155 = vadd.f32 %v1058, %v1154
        %v1156 = vpop.f32.mrb[0].mxu0
        %1157 = vmatprep.mubr.bf16.mxu0 %v716
        %1158 = vmatmul.mubr.bf16.gmra.mrb[0].mxu0 %v715
        %v1159 = vpop.f32.mrb[0].mxu0
        %v1160 = vadd.f32 %v1063, %v1159
        %v1161 = vpop.f32.mrb[0].mxu0
        %v1162 = vpop.f32.mrb[0].mxu0
        %v1163 = vadd.f32 %v1066, %v1162
        %v1164 = vpop.f32.mrb[0].mxu0
        %1165 = vmatprep.mubr.bf16.mxu0 %v720
        %1166 = vmatmul.mubr.bf16.gmra.mrb[0].mxu0 %v719
        %v1167 = vpop.f32.mrb[0].mxu0
        %v1168 = vadd.f32 %v1071, %v1167
        %v1169 = vpop.f32.mrb[0].mxu0
        %v1170 = vpop.f32.mrb[0].mxu0
        %v1171 = vadd.f32 %v1074, %v1170
        %v1172 = vpop.f32.mrb[0].mxu0
        %1173 = vmatprep.mubr.bf16.mxu0 %v724
        %1174 = vmatmul.mubr.bf16.gmra.mrb[0].mxu0 %v723
        %v1175 = vpop.f32.mrb[0].mxu0
        %v1176 = vadd.f32 %v1079, %v1175
        %v1177 = vpop.f32.mrb[0].mxu0
        %v1178 = vpop.f32.mrb[0].mxu0
        %v1179 = vadd.f32 %v1082, %v1178
        %v1180 = vpop.f32.mrb[0].mxu0
        %1181 = vdwg.mxu0
        %v1182 = vpack.c.bf16 %v1123, %v1120
        %v1183 = vpack.c.bf16 %v1131, %v1128
        %v1184 = vpack.c.bf16 %v1139, %v1136
        %v1185 = vpack.c.bf16 %v1147, %v1144
        %v1186 = vpack.c.bf16 %v1155, %v1152
        %v1187 = vpack.c.bf16 %v1163, %v1160
        %v1188 = vpack.c.bf16 %v1171, %v1168
        %v1189 = vpack.c.bf16 %v1179, %v1176
        %v1198 = vunpack.c.l.b16 %v1182
        %v1199 = vunpack.c.h.b16 %v1182
        %v1200 = vunpack.c.l.b16 %v1183
        %v1201 = vunpack.c.h.b16 %v1183
        %v1202 = vunpack.c.l.b16 %v1184
        %v1203 = vunpack.c.h.b16 %v1184
        %v1204 = vunpack.c.l.b16 %v1185
        %v1205 = vunpack.c.h.b16 %v1185
        %v1206 = vunpack.c.l.b16 %v1186
        %v1207 = vunpack.c.h.b16 %v1186
        %v1208 = vunpack.c.l.b16 %v1187
        %v1209 = vunpack.c.h.b16 %v1187
        %v1210 = vunpack.c.l.b16 %v1188
        %v1211 = vunpack.c.h.b16 %v1188
        %v1212 = vunpack.c.l.b16 %v1189
        %v1213 = vunpack.c.h.b16 %v1189
        %v1214 = vpack.c.b16 %v1198, %v1198
        %v1215 = vpack.c.b16 %v1199, %v1199
        %v1216 = vpack.c.b16 %v1200, %v1200
        %v1217 = vpack.c.b16 %v1201, %v1201
        %v1218 = vpack.c.b16 %v1202, %v1202
        %v1219 = vpack.c.b16 %v1203, %v1203
        %v1220 = vpack.c.b16 %v1204, %v1204
        %v1221 = vpack.c.b16 %v1205, %v1205
        %v1222 = vpack.c.b16 %v1206, %v1206
        %v1223 = vpack.c.b16 %v1207, %v1207
        %v1224 = vpack.c.b16 %v1208, %v1208
        %v1225 = vpack.c.b16 %v1209, %v1209
        %v1226 = vpack.c.b16 %v1210, %v1210
        %v1227 = vpack.c.b16 %v1211, %v1211
        %v1228 = vpack.c.b16 %v1212, %v1212
        %v1229 = vpack.c.b16 %v1213, %v1213
        %1246 = vst [vmem:[%s218] sm:$0xf] %v1214
        %1247 = vst [vmem:[%s218 + $0x4] sm:$0xf] %v1215
        %1248 = vst [vmem:[%s218 + $0x8] sm:$0xf] %v1216
        %1249 = vst [vmem:[%s218 + $0xc] sm:$0xf] %v1217
        %1250 = vst [vmem:[%s218 + $0x10] sm:$0xf] %v1218
        %1251 = vst [vmem:[%s218 + $0x14] sm:$0xf] %v1219
        %1252 = vst [vmem:[%s218 + $0x18] sm:$0xf] %v1220
        %1253 = vst [vmem:[%s218 + $0x1c] sm:$0xf] %v1221
        %1254 = vst [vmem:[%s218 + $0x20] sm:$0xf] %v1222
        %1255 = vst [vmem:[%s218 + $0x24] sm:$0xf] %v1223
        %1256 = vst [vmem:[%s218 + $0x28] sm:$0xf] %v1224
        %1257 = vst [vmem:[%s218 + $0x2c] sm:$0xf] %v1225
        %1258 = vst [vmem:[%s218 + $0x30] sm:$0xf] %v1226
        %1259 = vst [vmem:[%s218 + $0x34] sm:$0xf] %v1227
        %1260 = vst [vmem:[%s218 + $0x38] sm:$0xf] %v1228
        %1261 = vst [vmem:[%s218 + $0x3c] sm:$0xf] %v1229
        %s1262 = sand.u32 %s137, 1
        %s1263 = scalar_lea.sflag [#allocation3], %s1262
        %s1264 = sand.u32 %s137, 1
        %s1265 = smul.addr %s1264, 64
        %s1266 = scalar_lea.vmem [#allocation2], %s1265
        // Predicated region
        $region41: #{tpu_custom_call.1} parent=39 // pred_check
          %p1267 = pneg %p147
        $region42: #{tpu_custom_call.1} parent=39 // pred_check_branch
          %1269 = sbr.rel (%p1267) target = $region44
        $region43: #{tpu_custom_call.1} parent=39 // pred_region
          %s1270 = smul.u32 16, %s19
          %s1272 = ssub.s32 1024, 1024
          %1273 = vsyncadd %s1263, %s1272
          %s1274 = smul.addr %s1270, 64
          %s1275 = scalar_lea.hbm %s5, %s1274
          %s1276 = sshll.u32 %s1266, 4
          %s1277 = int_to_ptr.vmem [resolvable:$true] %s1276
          %1282 = dma.vmem_to_hbm [thread:$0]  %s1277, 1024, %s1275, %s1263, 64, 64, 4
        $region44: #{tpu_custom_call.1} parent=39 // pred_fallthru
          _
      $region40: #{tpu_custom_call.1} parent=5 // pred_fallthru
        _
      %p1283 = scmp.le.s32.totalorder 2, %s14
      // Predicated region
      $region45: #{tpu_custom_call.1} parent=5 // pred_check
        %p1284 = pneg %p1283
      $region46: #{tpu_custom_call.1} parent=5 // pred_check_branch
        %1286 = sbr.rel (%p1284) target = $region48
      $region47: #{tpu_custom_call.1} parent=5 // pred_region
        %s1287 = ssub.s32 %s14, 2
        // Predicated region
        $region49: #{tpu_custom_call.1} parent=47 // pred_check
          %p1288 = pneg %p153
        $region50: #{tpu_custom_call.1} parent=47 // pred_check_branch
          %1290 = sbr.rel (%p1288) target = $region52
        $region51: #{tpu_custom_call.1} parent=47 // pred_region
          %s1291 = sand.u32 %s138, 1
          %s1292 = scalar_lea.sflag [#allocation3], %s1291
          %s1293 = sand.u32 %s138, 1
          %s1294 = smul.addr %s1293, 64
          %s1295 = scalar_lea.vmem [#allocation2], %s1294
          %1296 = dma.done %s1292, 1024
        $region52: #{tpu_custom_call.1} parent=47 // pred_fallthru
          _
      $region48: #{tpu_custom_call.1} parent=5 // pred_fallthru
        _
    $region6: #{tpu_custom_call.1} parent=1 // loop_footer
      %s18 = sadd.s32 1, %s14
    $region7: #{tpu_custom_call.1} parent=1 // loop_footer_branch
      %13 = sbr.rel target = $region3
    $region8: #{tpu_custom_call.1} parent=1 // loop_exit
      _
    %1297 = vsyncpa [#allocation3], 1
    %s1298 = scalar_lea.sflag [#allocation3], 1
    %1299 = vsyncpa %s1298, 1

</llo_original>
